<compile_context>
chip_gen: v6e
topology: v6e:2x2x1
jax: 0.10.0
libtpu: 0.0.40
codegen_flags: <defaults>
</compile_context>

<pallas_src>
import functools

import jax
import jax.numpy as jnp
from jax.experimental import pallas as pl
from jax.experimental.pallas import tpu as pltpu


def encoder_kernel(x_ref, w1_ref, b1_ref, wml_ref, bml_ref, eps_ref, out_ref):
    """One batch tile of the encoder forward.

    out_ref is a lane-dense (TILE_B, OUT_PAD>=128) slab:
        lanes [0, L)      -> z
        lanes [L, 2L)     -> mean
        lanes [2L, 3L)    -> log_var
        lanes [3L, ...)   -> zero padding (sliced away in the wrapper)
    """
    latent = eps_ref.shape[1]

    x = x_ref[...]

    # FC_input + ReLU  (MXU matmul, f32 accumulation)
    h = jnp.dot(x, w1_ref[...], preferred_element_type=jnp.float32) + b1_ref[...]
    h = jnp.maximum(h, 0.0)

    # Fused FC_mean / FC_var: single (H, 2L) matmul -> [mean | log_var]
    ml = jnp.dot(h, wml_ref[...], preferred_element_type=jnp.float32) + bml_ref[...]
    mean = ml[:, :latent]
    log_var = ml[:, latent:]

    # Reparameterization: z = mean + exp(0.5 * log_var) * eps
    std = jnp.exp(0.5 * log_var)
    z = mean + std * eps_ref[...]

    slab = jnp.concatenate([z, mean, log_var], axis=1)          # (TILE_B, 3L)
    pad = out_ref.shape[1] - slab.shape[1]
    if pad > 0:  # pad lanes so the store is a full-width, unmasked vst stream
        slab = jnp.concatenate(
            [slab, jnp.zeros((slab.shape[0], pad), slab.dtype)], axis=1)
    out_ref[...] = slab.astype(out_ref.dtype)


def prepare_params(params):
    """One-time glue (call at init, NOT per forward step).

    Transposes PyTorch-convention (out, in) weights to (in, out) and fuses the
    mean / var projection weights into a single (H, 2L) matrix.
    """
    w1_t = jnp.asarray(params["w1"]).T                                  # (D_in, H)
    wml_t = jnp.concatenate(
        [jnp.asarray(params["wm"]).T, jnp.asarray(params["wv"]).T], axis=1)  # (H, 2L)
    b1 = jnp.asarray(params["b1"]).reshape(1, -1)                       # (1, H)
    bml = jnp.concatenate(
        [jnp.asarray(params["bm"]), jnp.asarray(params["bv"])]).reshape(1, -1)  # (1, 2L)
    return {"w1_t": w1_t, "b1": b1, "wml_t": wml_t, "bml": bml}


@functools.partial(jax.jit, static_argnames=("tile_b",))
def encoder_forward(x, prepared, eps, *, tile_b=256):
    """x: (B, D_in) f32; prepared: output of prepare_params; eps: (B, L) f32."""
    B, D_in = x.shape
    L = eps.shape[1]
    H = prepared["w1_t"].shape[1]

    # Batch tile: multiple of 8 sublanes, capped at the (padded) batch size.
    tile_b = max(8, (min(tile_b, B) // 8) * 8)
    B_pad = pl.cdiv(B, tile_b) * tile_b
    if B_pad != B:
        x = jnp.pad(x, ((0, B_pad - B), (0, 0)))
        eps = jnp.pad(eps, ((0, B_pad - B), (0, 0)))

    # Lane-dense output width (>= 128 so stores are unmasked full vregs).
    out_pad = pl.cdiv(3 * L, 128) * 128

    cost = pl.CostEstimate(
        flops=2 * B_pad * (D_in * H + H * 2 * L),
        transcendentals=B_pad * L,
        bytes_accessed=4 * (B_pad * D_in + D_in * H + H + H * 2 * L + 2 * L
                            + B_pad * L + B_pad * out_pad),
    )

    out = pl.pallas_call(
        encoder_kernel,
        out_shape=jax.ShapeDtypeStruct((B_pad, out_pad), jnp.float32),
        grid=(B_pad // tile_b,),
        in_specs=[
            pl.BlockSpec((tile_b, D_in), lambda i: (i, 0)),   # x tile
            pl.BlockSpec((D_in, H), lambda i: (0, 0)),        # W1^T (resident)
            pl.BlockSpec((1, H), lambda i: (0, 0)),           # b1
            pl.BlockSpec((H, 2 * L), lambda i: (0, 0)),       # [Wm|Wv]^T (resident)
            pl.BlockSpec((1, 2 * L), lambda i: (0, 0)),       # [bm|bv]
            pl.BlockSpec((tile_b, L), lambda i: (i, 0)),      # eps tile
        ],
        out_specs=pl.BlockSpec((tile_b, out_pad), lambda i: (i, 0)),
        compiler_params=pltpu.CompilerParams(
            dimension_semantics=("parallel",)),
        cost_estimate=cost,
    )(x, prepared["w1_t"], prepared["b1"], prepared["wml_t"], prepared["bml"], eps)

    z = out[:B, 0:L]
    mean = out[:B, L:2 * L]
    log_var = out[:B, 2 * L:3 * L]
    return z, mean, log_var


def init_params(key, input_dim, hidden_dim, latent_dim):
    """Deterministic synthetic init (PyTorch Linear convention: W is (out, in))."""
    k1, k2, k3, k4, k5, k6 = jax.random.split(key, 6)
    s1 = 1.0 / jnp.sqrt(input_dim)
    s2 = 1.0 / jnp.sqrt(hidden_dim)
    return {
        "w1": jax.random.uniform(k1, (hidden_dim, input_dim), jnp.float32, -s1, s1),
        "b1": jax.random.uniform(k2, (hidden_dim,), jnp.float32, -s1, s1),
        "wm": jax.random.uniform(k3, (latent_dim, hidden_dim), jnp.float32, -s2, s2),
        "bm": jax.random.uniform(k4, (latent_dim,), jnp.float32, -s2, s2),
        "wv": jax.random.uniform(k5, (latent_dim, hidden_dim), jnp.float32, -s2, s2),
        "bv": jax.random.uniform(k6, (latent_dim,), jnp.float32, -s2, s2),
    }


def encoder_ref(x, params, eps):
    """Pure-JAX reference of the PyTorch forward for correctness checking."""
    h = jax.nn.relu(x @ params["w1"].T + params["b1"])
    mean = h @ params["wm"].T + params["bm"]
    log_var = h @ params["wv"].T + params["bv"]
    std = jnp.exp(0.5 * log_var)
    z = mean + std * eps
    return z, mean, log_var


if __name__ == "__main__":
    # MNIST VAE dims from the module (input 28*28, hidden 400, latent 20).
    B, INPUT_DIM, HIDDEN_DIM, LATENT_DIM = 256, 784, 400, 20
    TILE_B = 128  # multiple of 8; grid of 2 batch tiles exercises the pipeline

    key = jax.random.PRNGKey(0)
    k_x, k_p, k_eps = jax.random.split(key, 3)

    x = jax.random.normal(k_x, (B, INPUT_DIM), dtype=jnp.float32)
    params = init_params(k_p, INPUT_DIM, HIDDEN_DIM, LATENT_DIM)
    # epsilon ~ N(0,1), generated deterministically outside the kernel
    eps = jax.random.normal(k_eps, (B, LATENT_DIM), dtype=jnp.float32)

    # One-time parameter prep (transpose + mean/var fusion) — not per step.
    prepared = prepare_params(params)

    z, mean, log_var = jax.block_until_ready(
        encoder_forward(x, prepared, eps, tile_b=TILE_B))

    # Check against the pure-JAX reference.
    z_r, mean_r, logvar_r = encoder_ref(x, params, eps)
    assert jnp.allclose(mean, mean_r, atol=2e-4, rtol=2e-4)
    assert jnp.allclose(log_var, logvar_r, atol=2e-4, rtol=2e-4)
    assert jnp.allclose(z, z_r, atol=2e-4, rtol=2e-4)

    print("KERNEL_OK")
</pallas_src>

<mosaic_0001>
module attributes {stable_mosaic.version = 11 : i64} {
  func.func @encoder_kernel(%arg0: i32, %arg1: memref<128x784xf32, #tpu.memory_space<vmem>>, %arg2: memref<784x400xf32, #tpu.memory_space<vmem>>, %arg3: memref<1x400xf32, #tpu.memory_space<vmem>>, %arg4: memref<400x40xf32, #tpu.memory_space<vmem>>, %arg5: memref<1x40xf32, #tpu.memory_space<vmem>>, %arg6: memref<128x20xf32, #tpu.memory_space<vmem>>, %arg7: memref<128x128xf32, #tpu.memory_space<vmem>>) attributes {dimension_semantics = [#tpu.dimension_semantics<parallel>], iteration_bounds = array<i64: 2>, scalar_prefetch = 0 : i64, scratch_operands = 0 : i64, tpu.core_type = #tpu.core_type<tc>, window_params = [{transform_indices = @transform_0, window_bounds = array<i64: 128, 784>}, {pipeline_mode = #tpu.pipeline_mode<synchronous>, transform_indices = @transform_1, window_bounds = array<i64: 784, 400>}, {pipeline_mode = #tpu.pipeline_mode<synchronous>, transform_indices = @transform_2, window_bounds = array<i64: 1, 400>}, {pipeline_mode = #tpu.pipeline_mode<synchronous>, transform_indices = @transform_3, window_bounds = array<i64: 400, 40>}, {pipeline_mode = #tpu.pipeline_mode<synchronous>, transform_indices = @transform_4, window_bounds = array<i64: 1, 40>}, {transform_indices = @transform_5, window_bounds = array<i64: 128, 20>}, {transform_indices = @transform_6, window_bounds = array<i64: 128, 128>}]} {
    %c0 = arith.constant 0 : index
    %c0_0 = arith.constant 0 : index
    %0 = vector.load %arg1[%c0, %c0_0] : memref<128x784xf32, #tpu.memory_space<vmem>>, vector<128x784xf32>
    %c0_1 = arith.constant 0 : index
    %c0_2 = arith.constant 0 : index
    %1 = vector.load %arg2[%c0_1, %c0_2] : memref<784x400xf32, #tpu.memory_space<vmem>>, vector<784x400xf32>
    %cst = arith.constant dense<0.000000e+00> : vector<128x400xf32>
    %2 = tpu.matmul %0, %1, %cst {dimension_numbers = #tpu.dot_dimension_numbers<[1], [0], [0], [1], [0, 0, 1, 1], [], []>} : vector<128x784xf32>, vector<784x400xf32>, vector<128x400xf32> -> vector<128x400xf32>
    %c0_3 = arith.constant 0 : index
    %c0_4 = arith.constant 0 : index
    %3 = vector.load %arg3[%c0_3, %c0_4] : memref<1x400xf32, #tpu.memory_space<vmem>>, vector<1x400xf32>
    %4 = vector.broadcast %3 : vector<1x400xf32> to vector<128x400xf32>
    %5 = arith.addf %2, %4 : vector<128x400xf32>
    %cst_5 = arith.constant 0.000000e+00 : f32
    %6 = vector.broadcast %cst_5 : f32 to vector<128x400xf32>
    %7 = arith.maximumf %5, %6 : vector<128x400xf32>
    %c0_6 = arith.constant 0 : index
    %c0_7 = arith.constant 0 : index
    %8 = vector.load %arg4[%c0_6, %c0_7] : memref<400x40xf32, #tpu.memory_space<vmem>>, vector<400x40xf32>
    %cst_8 = arith.constant dense<0.000000e+00> : vector<128x40xf32>
    %9 = tpu.matmul %7, %8, %cst_8 {dimension_numbers = #tpu.dot_dimension_numbers<[1], [0], [0], [1], [0, 0, 1, 1], [], []>} : vector<128x400xf32>, vector<400x40xf32>, vector<128x40xf32> -> vector<128x40xf32>
    %c0_9 = arith.constant 0 : index
    %c0_10 = arith.constant 0 : index
    %10 = vector.load %arg5[%c0_9, %c0_10] : memref<1x40xf32, #tpu.memory_space<vmem>>, vector<1x40xf32>
    %11 = vector.broadcast %10 : vector<1x40xf32> to vector<128x40xf32>
    %12 = arith.addf %9, %11 : vector<128x40xf32>
    %13 = vector.extract_strided_slice %12 {offsets = [0, 0], sizes = [128, 20], strides = [1, 1]} : vector<128x40xf32> to vector<128x20xf32>
    %14 = vector.extract_strided_slice %12 {offsets = [0, 20], sizes = [128, 20], strides = [1, 1]} : vector<128x40xf32> to vector<128x20xf32>
    %cst_11 = arith.constant 5.000000e-01 : f32
    %15 = vector.broadcast %cst_11 : f32 to vector<128x20xf32>
    %16 = arith.mulf %15, %14 : vector<128x20xf32>
    %17 = math.exp %16 : vector<128x20xf32>
    %c0_12 = arith.constant 0 : index
    %c0_13 = arith.constant 0 : index
    %18 = vector.load %arg6[%c0_12, %c0_13] : memref<128x20xf32, #tpu.memory_space<vmem>>, vector<128x20xf32>
    %19 = arith.mulf %17, %18 : vector<128x20xf32>
    %20 = arith.addf %13, %19 : vector<128x20xf32>
    %21 = tpu.concatenate %20, %13, %14 in 1 : vector<128x20xf32>, vector<128x20xf32>, vector<128x20xf32> -> vector<128x60xf32>
    %cst_14 = arith.constant 0.000000e+00 : f32
    %22 = vector.broadcast %cst_14 : f32 to vector<128x68xf32>
    %23 = tpu.concatenate %21, %22 in 1 : vector<128x60xf32>, vector<128x68xf32> -> vector<128x128xf32>
    %c0_15 = arith.constant 0 : index
    %c0_16 = arith.constant 0 : index
    %24 = vector.load %arg7[%c0_15, %c0_16] : memref<128x128xf32, #tpu.memory_space<vmem>>, vector<128x128xf32>
    tpu.vector_store %arg7[%c0_15, %c0_16], %23 {strides = array<i32>} : memref<128x128xf32, #tpu.memory_space<vmem>>, vector<128x128xf32>,
    return
  }
  func.func @transform_0(%arg0: i32) -> (i32, i32) {
    %c0_i32 = arith.constant 0 : i32
    %c0_i32_0 = arith.constant 0 : i32
    return %arg0, %c0_i32 : i32, i32
  }
  func.func @transform_1(%arg0: i32) -> (i32, i32) {
    %c0_i32 = arith.constant 0 : i32
    %c0_i32_0 = arith.constant 0 : i32
    %c0_i32_1 = arith.constant 0 : i32
    return %c0_i32, %c0_i32_0 : i32, i32
  }
  func.func @transform_2(%arg0: i32) -> (i32, i32) {
    %c0_i32 = arith.constant 0 : i32
    %c0_i32_0 = arith.constant 0 : i32
    %c0_i32_1 = arith.constant 0 : i32
    return %c0_i32, %c0_i32_0 : i32, i32
  }
  func.func @transform_3(%arg0: i32) -> (i32, i32) {
    %c0_i32 = arith.constant 0 : i32
    %c0_i32_0 = arith.constant 0 : i32
    %c0_i32_1 = arith.constant 0 : i32
    return %c0_i32, %c0_i32_0 : i32, i32
  }
  func.func @transform_4(%arg0: i32) -> (i32, i32) {
    %c0_i32 = arith.constant 0 : i32
    %c0_i32_0 = arith.constant 0 : i32
    %c0_i32_1 = arith.constant 0 : i32
    return %c0_i32, %c0_i32_0 : i32, i32
  }
  func.func @transform_5(%arg0: i32) -> (i32, i32) {
    %c0_i32 = arith.constant 0 : i32
    %c0_i32_0 = arith.constant 0 : i32
    return %arg0, %c0_i32 : i32, i32
  }
  func.func @transform_6(%arg0: i32) -> (i32, i32) {
    %c0_i32 = arith.constant 0 : i32
    %c0_i32_0 = arith.constant 0 : i32
    return %arg0, %c0_i32 : i32, i32
  }
}

</mosaic_0001>

<llo_original>
// kernel: encoder_forward.1
$region0: #{encoder_forward.1}
  #allocation0 [shape = 'u32[]', space=smem, size = 0x4, offset = 0x4, fixed_abs, tag = 'smem constant byte address 0x4 - core index']
  #allocation1 [shape = 'u32[144,128]{1,0:T(1,128)}', space=vmem, size = 0x12000, scoped, tag = 'internal scratch']
  %s0 = inlined_call_operand.vmem [shape: f32[256,784], index: 0, kind: input, shape index: {}]
  %s1 = inlined_call_operand.vmem [shape: f32[784,400], index: 1, kind: input, shape index: {}]
  %s2 = inlined_call_operand.vmem [shape: f32[1,400], index: 2, kind: input, shape index: {}]
  %s3 = inlined_call_operand.vmem [shape: f32[400,40], index: 3, kind: input, shape index: {}]
  %s4 = inlined_call_operand.vmem [shape: f32[1,40], index: 4, kind: input, shape index: {}]
  %s5 = inlined_call_operand.vmem [shape: f32[256,20], index: 5, kind: input, shape index: {}]
  %s6 = inlined_call_operand.vmem [shape: f32[256,128], index: 6, kind: output, shape index: {}]
  %s7 = sld [smem:[#allocation0]]
  $region57: #{encoder_forward.1} parent=0
    _
  %s9 = ssub.s32 1, %s7
  %s10 = scalar_select 0, %s9, %s7
  loop: start=0, step=1, limit=4
  $region2: #{encoder_forward.1} parent=0 // loop_pre_header
    _
  $region3: #{encoder_forward.1} parent=0 // loop_header
    %s12 = sphi 0, %s16
    %p13 = scmp.ge.s32.totalorder %s12, 4
    %s22 = sphi 0, %s24
    %s25 = sphi 0, %s22
    %s26 = sphi 0, %s25
    %s42 = sphi 0, %s26
    %s46 = sphi 0, %s46
    %s48 = sphi 0, %s46
    %s49 = sphi 0, %s48
    %s63 = sphi 0, %s49
    %s67 = sphi 0, %s67
    %s69 = sphi 0, %s67
    %s70 = sphi 0, %s69
    %s84 = sphi 0, %s70
    %s88 = sphi 0, %s88
    %s90 = sphi 0, %s88
    %s91 = sphi 0, %s90
    %s105 = sphi 0, %s91
    %s109 = sphi 0, %s109
    %s111 = sphi 0, %s109
    %s112 = sphi 0, %s111
    %s126 = sphi 0, %s112
    %s132 = sphi 0, %s134
    %s135 = sphi 0, %s132
    %s136 = sphi 0, %s135
    %s152 = sphi 0, %s136
    %s158 = sphi 0, %s160
    %s161 = sphi 0, %s158
    %s162 = sphi 0, %s161
    %s178 = sphi 0, %s162
  $region4: #{encoder_forward.1} parent=0 // loop_header_branch
    %15 = sbr.rel (%p13) target = $region8
  $region5: #{encoder_forward.1} parent=0 // loop_body
    %s17 = ssub.s32 %s12, 1
    %s18 = ssub.s32 %s12, 2
    %s19 = sadd.s32 %s12, 1
    %s20 = ssub.s32 %s12, %s19
    %p21 = scmp.eq.s32.totalorder %s20, 0
    %s23 = sadd.s32 %s22, 1
    %s24 = scalar_select %p21, %s22, %s23
    %p27 = pneg %p21
    %p28 = scmp.eq.s32.totalorder %s12, 1
    %p29 = por %p27, %p28
    %p30 = scmp.ne.s32.totalorder %s22, %s25
    %p31 = scmp.eq.s32.totalorder %s12, 0
    %p32 = por %p30, %p31
    %p33 = scmp.ne.s32.totalorder %s22, %s25
    %p34 = scmp.eq.s32.totalorder %s17, 1
    %p35 = por %p33, %p34
    %p36 = scmp.ne.s32.totalorder %s25, %s26
    %p37 = scmp.eq.s32.totalorder %s17, 0
    %p38 = por %p36, %p37
    %p39 = scmp.ne.s32.totalorder %s25, %s26
    %p40 = scmp.eq.s32.totalorder %s18, 1
    %p41 = por %p39, %p40
    %p43 = scmp.ne.s32.totalorder %s26, %s42
    %p44 = scmp.eq.s32.totalorder %s18, 0
    %p45 = por %p43, %p44
    %s47 = sadd.s32 %s46, 1
    %p50 = scmp.eq.s32.totalorder %s12, 1
    %p51 = scmp.ne.s32.totalorder %s46, %s48
    %p52 = scmp.eq.s32.totalorder %s12, 0
    %p53 = por %p51, %p52
    %p54 = scmp.ne.s32.totalorder %s46, %s48
    %p55 = scmp.eq.s32.totalorder %s17, 1
    %p56 = por %p54, %p55
    %p57 = scmp.ne.s32.totalorder %s48, %s49
    %p58 = scmp.eq.s32.totalorder %s17, 0
    %p59 = por %p57, %p58
    %p60 = scmp.ne.s32.totalorder %s48, %s49
    %p61 = scmp.eq.s32.totalorder %s18, 1
    %p62 = por %p60, %p61
    %p64 = scmp.ne.s32.totalorder %s49, %s63
    %p65 = scmp.eq.s32.totalorder %s18, 0
    %p66 = por %p64, %p65
    %s68 = sadd.s32 %s67, 1
    %p71 = scmp.eq.s32.totalorder %s12, 1
    %p72 = scmp.ne.s32.totalorder %s67, %s69
    %p73 = scmp.eq.s32.totalorder %s12, 0
    %p74 = por %p72, %p73
    %p75 = scmp.ne.s32.totalorder %s67, %s69
    %p76 = scmp.eq.s32.totalorder %s17, 1
    %p77 = por %p75, %p76
    %p78 = scmp.ne.s32.totalorder %s69, %s70
    %p79 = scmp.eq.s32.totalorder %s17, 0
    %p80 = por %p78, %p79
    %p81 = scmp.ne.s32.totalorder %s69, %s70
    %p82 = scmp.eq.s32.totalorder %s18, 1
    %p83 = por %p81, %p82
    %p85 = scmp.ne.s32.totalorder %s70, %s84
    %p86 = scmp.eq.s32.totalorder %s18, 0
    %p87 = por %p85, %p86
    %s89 = sadd.s32 %s88, 1
    %p92 = scmp.eq.s32.totalorder %s12, 1
    %p93 = scmp.ne.s32.totalorder %s88, %s90
    %p94 = scmp.eq.s32.totalorder %s12, 0
    %p95 = por %p93, %p94
    %p96 = scmp.ne.s32.totalorder %s88, %s90
    %p97 = scmp.eq.s32.totalorder %s17, 1
    %p98 = por %p96, %p97
    %p99 = scmp.ne.s32.totalorder %s90, %s91
    %p100 = scmp.eq.s32.totalorder %s17, 0
    %p101 = por %p99, %p100
    %p102 = scmp.ne.s32.totalorder %s90, %s91
    %p103 = scmp.eq.s32.totalorder %s18, 1
    %p104 = por %p102, %p103
    %p106 = scmp.ne.s32.totalorder %s91, %s105
    %p107 = scmp.eq.s32.totalorder %s18, 0
    %p108 = por %p106, %p107
    %s110 = sadd.s32 %s109, 1
    %p113 = scmp.eq.s32.totalorder %s12, 1
    %p114 = scmp.ne.s32.totalorder %s109, %s111
    %p115 = scmp.eq.s32.totalorder %s12, 0
    %p116 = por %p114, %p115
    %p117 = scmp.ne.s32.totalorder %s109, %s111
    %p118 = scmp.eq.s32.totalorder %s17, 1
    %p119 = por %p117, %p118
    %p120 = scmp.ne.s32.totalorder %s111, %s112
    %p121 = scmp.eq.s32.totalorder %s17, 0
    %p122 = por %p120, %p121
    %p123 = scmp.ne.s32.totalorder %s111, %s112
    %p124 = scmp.eq.s32.totalorder %s18, 1
    %p125 = por %p123, %p124
    %p127 = scmp.ne.s32.totalorder %s112, %s126
    %p128 = scmp.eq.s32.totalorder %s18, 0
    %p129 = por %p127, %p128
    %s130 = ssub.s32 %s12, %s19
    %p131 = scmp.eq.s32.totalorder %s130, 0
    %s133 = sadd.s32 %s132, 1
    %s134 = scalar_select %p131, %s132, %s133
    %p137 = pneg %p131
    %p138 = scmp.eq.s32.totalorder %s12, 1
    %p139 = por %p137, %p138
    %p140 = scmp.ne.s32.totalorder %s132, %s135
    %p141 = scmp.eq.s32.totalorder %s12, 0
    %p142 = por %p140, %p141
    %p143 = scmp.ne.s32.totalorder %s132, %s135
    %p144 = scmp.eq.s32.totalorder %s17, 1
    %p145 = por %p143, %p144
    %p146 = scmp.ne.s32.totalorder %s135, %s136
    %p147 = scmp.eq.s32.totalorder %s17, 0
    %p148 = por %p146, %p147
    %p149 = scmp.ne.s32.totalorder %s135, %s136
    %p150 = scmp.eq.s32.totalorder %s18, 1
    %p151 = por %p149, %p150
    %p153 = scmp.ne.s32.totalorder %s136, %s152
    %p154 = scmp.eq.s32.totalorder %s18, 0
    %p155 = por %p153, %p154
    %s156 = ssub.s32 %s12, %s19
    %p157 = scmp.eq.s32.totalorder %s156, 0
    %s159 = sadd.s32 %s158, 1
    %s160 = scalar_select %p157, %s158, %s159
    %p163 = pneg %p157
    %p164 = scmp.eq.s32.totalorder %s12, 1
    %p165 = por %p163, %p164
    %p166 = scmp.ne.s32.totalorder %s158, %s161
    %p167 = scmp.eq.s32.totalorder %s12, 0
    %p168 = por %p166, %p167
    %p169 = scmp.ne.s32.totalorder %s158, %s161
    %p170 = scmp.eq.s32.totalorder %s17, 1
    %p171 = por %p169, %p170
    %p172 = scmp.ne.s32.totalorder %s161, %s162
    %p173 = scmp.eq.s32.totalorder %s17, 0
    %p174 = por %p172, %p173
    %p175 = scmp.ne.s32.totalorder %s161, %s162
    %p176 = scmp.eq.s32.totalorder %s18, 1
    %p177 = por %p175, %p176
    %p179 = scmp.ne.s32.totalorder %s162, %s178
    %p180 = scmp.eq.s32.totalorder %s18, 0
    %p181 = por %p179, %p180
    %p182 = scmp.le.s32.totalorder 1, %s12
    %p183 = scmp.lt.s32.totalorder %s12, 3
    %p184 = pnand %p182, %p183
    %p185 = pneg %p184
    // Predicated region
    $region9: #{encoder_forward.1} parent=5 // pred_check
      _
    $region10: #{encoder_forward.1} parent=5 // pred_check_branch
      %187 = sbr.rel (%p184) target = $region12
    $region11: #{encoder_forward.1} parent=5 // pred_region
      %s188 = ssub.s32 %s12, 1
      // Predicated region
      $region13: #{encoder_forward.1} parent=11 // pred_check
        %p189 = pneg %p59
      $region14: #{encoder_forward.1} parent=11 // pred_check_branch
        %191 = sbr.rel (%p189) target = $region16
      $region15: #{encoder_forward.1} parent=11 // pred_region
        _
      $region16: #{encoder_forward.1} parent=11 // pred_fallthru
        _
      // Predicated region
      $region17: #{encoder_forward.1} parent=11 // pred_check
        %p192 = pneg %p80
      $region18: #{encoder_forward.1} parent=11 // pred_check_branch
        %194 = sbr.rel (%p192) target = $region20
      $region19: #{encoder_forward.1} parent=11 // pred_region
        _
      $region20: #{encoder_forward.1} parent=11 // pred_fallthru
        _
      // Predicated region
      $region21: #{encoder_forward.1} parent=11 // pred_check
        %p195 = pneg %p101
      $region22: #{encoder_forward.1} parent=11 // pred_check_branch
        %197 = sbr.rel (%p195) target = $region24
      $region23: #{encoder_forward.1} parent=11 // pred_region
        _
      $region24: #{encoder_forward.1} parent=11 // pred_fallthru
        _
      // Predicated region
      $region25: #{encoder_forward.1} parent=11 // pred_check
        %p198 = pneg %p122
      $region26: #{encoder_forward.1} parent=11 // pred_check_branch
        %200 = sbr.rel (%p198) target = $region28
      $region27: #{encoder_forward.1} parent=11 // pred_region
        _
      $region28: #{encoder_forward.1} parent=11 // pred_fallthru
        _
    $region12: #{encoder_forward.1} parent=5 // pred_fallthru
      _
    %p201 = scmp.lt.s32.totalorder %s12, 2
    // Predicated region
    $region29: #{encoder_forward.1} parent=5 // pred_check
      %p202 = pneg %p201
    $region30: #{encoder_forward.1} parent=5 // pred_check_branch
      %204 = sbr.rel (%p202) target = $region32
    $region31: #{encoder_forward.1} parent=5 // pred_region
      // Predicated region
      $region33: #{encoder_forward.1} parent=31 // pred_check
        %p205 = pneg %p32
      $region34: #{encoder_forward.1} parent=31 // pred_check_branch
        %207 = sbr.rel (%p205) target = $region36
      $region35: #{encoder_forward.1} parent=31 // pred_region
        %s208 = smul.u32 16, %s12
        %p209 = scmp.lt.s32.totalorder %s208, 31
        %s210 = scalar_select %p209, %s208, 31
        %s211 = smul.addr %s210, 7
        %s212 = smul.addr %s211, 8
        %s213 = scalar_lea.vmem %s0, %s212
        %s214 = smul.u32 16, %s12
      $region36: #{encoder_forward.1} parent=31 // pred_fallthru
        _
      // Predicated region
      $region37: #{encoder_forward.1} parent=31 // pred_check
        %p215 = pneg %p142
      $region38: #{encoder_forward.1} parent=31 // pred_check_branch
        %217 = sbr.rel (%p215) target = $region40
      $region39: #{encoder_forward.1} parent=31 // pred_region
        %s218 = smul.u32 16, %s12
        %p219 = scmp.lt.s32.totalorder %s218, 31
        %s220 = scalar_select %p219, %s218, 31
        %s221 = smul.addr %s220, 8
        %s222 = scalar_lea.vmem %s5, %s221
        %s223 = smul.u32 16, %s12
      $region40: #{encoder_forward.1} parent=31 // pred_fallthru
        _
    $region32: #{encoder_forward.1} parent=5 // pred_fallthru
      _
    %p224 = scmp.le.s32.totalorder 1, %s12
    %p225 = scmp.lt.s32.totalorder %s12, 3
    %p226 = pnand %p224, %p225
    %p227 = pneg %p226
    // Predicated region
    $region41: #{encoder_forward.1} parent=5 // pred_check
      _
    $region42: #{encoder_forward.1} parent=5 // pred_check_branch
      %229 = sbr.rel (%p226) target = $region44
    $region43: #{encoder_forward.1} parent=5 // pred_region
      %s230 = ssub.s32 %s12, 1
      %s231 = smul.u32 16, %s17
      %p232 = scmp.lt.s32.totalorder %s231, 31
      %s233 = scalar_select %p232, %s231, 31
      %s234 = smul.addr %s233, 7
      %s235 = smul.addr %s234, 8
      %s236 = scalar_lea.vmem %s0, %s235
      %p237 = pneg %p38
      %p238 = pneg %p35
      %p239 = pneg %p59
      %p240 = pneg %p56
      %p241 = pneg %p80
      %p242 = pneg %p77
      %p243 = pneg %p101
      %p244 = pneg %p98
      %p245 = pneg %p122
      %p246 = pneg %p119
      %s247 = smul.u32 16, %s17
      %p248 = scmp.lt.s32.totalorder %s247, 31
      %s249 = scalar_select %p248, %s247, 31
      %s250 = smul.addr %s249, 8
      %s251 = scalar_lea.vmem %s5, %s250
      %p252 = pneg %p148
      %p253 = pneg %p145
      %p254 = pneg %p174
      %p255 = pneg %p171
      %s256 = smul.u32 16, %s17
      %p257 = scmp.lt.s32.totalorder %s256, 31
      %s258 = scalar_select %p257, %s256, 31
      %s259 = smul.addr %s258, 8
      %s260 = scalar_lea.vmem %s6, %s259
      %s261 = smul.u32 16, %s17
      %p262 = scmp.lt.s32.totalorder %s261, 31
      %s263 = scalar_select %p262, %s261, 31
      %s264 = smul.addr %s263, 7
      %s265 = smul.addr %s264, 8
      %s266 = scalar_lea.vmem %s0, %s265
      %s267 = smul.u32 16, %s17
      %s268 = smul.u32 16, %s17
      %p269 = scmp.lt.s32.totalorder %s268, 31
      %s270 = scalar_select %p269, %s268, 31
      %s271 = smul.addr %s270, 8
      %s272 = scalar_lea.vmem %s5, %s271
      %s273 = smul.u32 16, %s17
      %s274 = smul.u32 16, %s17
      %p275 = scmp.lt.s32.totalorder %s274, 31
      %s276 = scalar_select %p275, %s274, 31
      %s277 = smul.addr %s276, 8
      %s278 = scalar_lea.vmem %s6, %s277
      %s279 = smul.u32 16, %s17
      %v280 = vld [vmem:[%s266] sm:$0xff]
      %v281 = vld [vmem:[%s266 + $0x8] sm:$0xff]
      %v282 = vld [vmem:[%s266 + $0x10] sm:$0xff]
      %v283 = vld [vmem:[%s266 + $0x18] sm:$0xff]
      %v284 = vld [vmem:[%s266 + $0x20] sm:$0xff]
      %v285 = vld [vmem:[%s266 + $0x28] sm:$0xff]
      %v286 = vld [vmem:[%s266 + $0x30] sm:$0xff]
      %v287 = vld [vmem:[%s266 + $0x38] sm:$0xff]
      %v288 = vld [vmem:[%s266 + $0x40] sm:$0xff]
      %v289 = vld [vmem:[%s266 + $0x48] sm:$0xff]
      %v290 = vld [vmem:[%s266 + $0x50] sm:$0xff]
      %v291 = vld [vmem:[%s266 + $0x58] sm:$0xff]
      %v292 = vld [vmem:[%s266 + $0x60] sm:$0xff]
      %v293 = vld [vmem:[%s266 + $0x68] sm:$0xff]
      %v294 = vld [vmem:[%s266 + $0x70] sm:$0xff]
      %v295 = vld [vmem:[%s266 + $0x78] sm:$0xff]
      %v296 = vld [vmem:[%s266 + $0x80] sm:$0xff]
      %v297 = vld [vmem:[%s266 + $0x88] sm:$0xff]
      %v298 = vld [vmem:[%s266 + $0x90] sm:$0xff]
      %v299 = vld [vmem:[%s266 + $0x98] sm:$0xff]
      %v300 = vld [vmem:[%s266 + $0xa0] sm:$0xff]
      %v301 = vld [vmem:[%s266 + $0xa8] sm:$0xff]
      %v302 = vld [vmem:[%s266 + $0xb0] sm:$0xff]
      %v303 = vld [vmem:[%s266 + $0xb8] sm:$0xff]
      %v304 = vld [vmem:[%s266 + $0xc0] sm:$0xff]
      %v305 = vld [vmem:[%s266 + $0xc8] sm:$0xff]
      %v306 = vld [vmem:[%s266 + $0xd0] sm:$0xff]
      %v307 = vld [vmem:[%s266 + $0xd8] sm:$0xff]
      %v308 = vld [vmem:[%s266 + $0xe0] sm:$0xff]
      %v309 = vld [vmem:[%s266 + $0xe8] sm:$0xff]
      %v310 = vld [vmem:[%s266 + $0xf0] sm:$0xff]
      %v311 = vld [vmem:[%s266 + $0xf8] sm:$0xff]
      %v312 = vld [vmem:[%s266 + $0x100] sm:$0xff]
      %v313 = vld [vmem:[%s266 + $0x108] sm:$0xff]
      %v314 = vld [vmem:[%s266 + $0x110] sm:$0xff]
      %v315 = vld [vmem:[%s266 + $0x118] sm:$0xff]
      %v316 = vld [vmem:[%s266 + $0x120] sm:$0xff]
      %v317 = vld [vmem:[%s266 + $0x128] sm:$0xff]
      %v318 = vld [vmem:[%s266 + $0x130] sm:$0xff]
      %v319 = vld [vmem:[%s266 + $0x138] sm:$0xff]
      %v320 = vld [vmem:[%s266 + $0x140] sm:$0xff]
      %v321 = vld [vmem:[%s266 + $0x148] sm:$0xff]
      %v322 = vld [vmem:[%s266 + $0x150] sm:$0xff]
      %v323 = vld [vmem:[%s266 + $0x158] sm:$0xff]
      %v324 = vld [vmem:[%s266 + $0x160] sm:$0xff]
      %v325 = vld [vmem:[%s266 + $0x168] sm:$0xff]
      %v326 = vld [vmem:[%s266 + $0x170] sm:$0xff]
      %v327 = vld [vmem:[%s266 + $0x178] sm:$0xff]
      %v328 = vld [vmem:[%s266 + $0x180] sm:$0xff]
      %v329 = vld [vmem:[%s266 + $0x188] sm:$0xff]
      %v330 = vld [vmem:[%s266 + $0x190] sm:$0xff]
      %v331 = vld [vmem:[%s266 + $0x198] sm:$0xff]
      %v332 = vld [vmem:[%s266 + $0x1a0] sm:$0xff]
      %v333 = vld [vmem:[%s266 + $0x1a8] sm:$0xff]
      %v334 = vld [vmem:[%s266 + $0x1b0] sm:$0xff]
      %v335 = vld [vmem:[%s266 + $0x1b8] sm:$0xff]
      %v336 = vld [vmem:[%s266 + $0x1c0] sm:$0xff]
      %v337 = vld [vmem:[%s266 + $0x1c8] sm:$0xff]
      %v338 = vld [vmem:[%s266 + $0x1d0] sm:$0xff]
      %v339 = vld [vmem:[%s266 + $0x1d8] sm:$0xff]
      %v340 = vld [vmem:[%s266 + $0x1e0] sm:$0xff]
      %v341 = vld [vmem:[%s266 + $0x1e8] sm:$0xff]
      %v342 = vld [vmem:[%s266 + $0x1f0] sm:$0xff]
      %v343 = vld [vmem:[%s266 + $0x1f8] sm:$0xff]
      %v344 = vld [vmem:[%s266 + $0x200] sm:$0xff]
      %v345 = vld [vmem:[%s266 + $0x208] sm:$0xff]
      %v346 = vld [vmem:[%s266 + $0x210] sm:$0xff]
      %v347 = vld [vmem:[%s266 + $0x218] sm:$0xff]
      %v348 = vld [vmem:[%s266 + $0x220] sm:$0xff]
      %v349 = vld [vmem:[%s266 + $0x228] sm:$0xff]
      %v350 = vld [vmem:[%s266 + $0x230] sm:$0xff]
      %v351 = vld [vmem:[%s266 + $0x238] sm:$0xff]
      %v352 = vld [vmem:[%s266 + $0x240] sm:$0xff]
      %v353 = vld [vmem:[%s266 + $0x248] sm:$0xff]
      %v354 = vld [vmem:[%s266 + $0x250] sm:$0xff]
      %v355 = vld [vmem:[%s266 + $0x258] sm:$0xff]
      %v356 = vld [vmem:[%s266 + $0x260] sm:$0xff]
      %v357 = vld [vmem:[%s266 + $0x268] sm:$0xff]
      %v358 = vld [vmem:[%s266 + $0x270] sm:$0xff]
      %v359 = vld [vmem:[%s266 + $0x278] sm:$0xff]
      %v360 = vld [vmem:[%s266 + $0x280] sm:$0xff]
      %v361 = vld [vmem:[%s266 + $0x288] sm:$0xff]
      %v362 = vld [vmem:[%s266 + $0x290] sm:$0xff]
      %v363 = vld [vmem:[%s266 + $0x298] sm:$0xff]
      %v364 = vld [vmem:[%s266 + $0x2a0] sm:$0xff]
      %v365 = vld [vmem:[%s266 + $0x2a8] sm:$0xff]
      %v366 = vld [vmem:[%s266 + $0x2b0] sm:$0xff]
      %v367 = vld [vmem:[%s266 + $0x2b8] sm:$0xff]
      %v368 = vld [vmem:[%s266 + $0x2c0] sm:$0xff]
      %v369 = vld [vmem:[%s266 + $0x2c8] sm:$0xff]
      %v370 = vld [vmem:[%s266 + $0x2d0] sm:$0xff]
      %v371 = vld [vmem:[%s266 + $0x2d8] sm:$0xff]
      %v372 = vld [vmem:[%s266 + $0x2e0] sm:$0xff]
      %v373 = vld [vmem:[%s266 + $0x2e8] sm:$0xff]
      %v374 = vld [vmem:[%s266 + $0x2f0] sm:$0xff]
      %v375 = vld [vmem:[%s266 + $0x2f8] sm:$0xff]
      %v376 = vld [vmem:[%s266 + $0x300] sm:$0xff]
      %v377 = vld [vmem:[%s266 + $0x308] sm:$0xff]
      %v378 = vld [vmem:[%s266 + $0x310] sm:$0xff]
      %v379 = vld [vmem:[%s266 + $0x318] sm:$0xff]
      %v380 = vld [vmem:[%s266 + $0x320] sm:$0xff]
      %v381 = vld [vmem:[%s266 + $0x328] sm:$0xff]
      %v382 = vld [vmem:[%s266 + $0x330] sm:$0xff]
      %v383 = vld [vmem:[%s266 + $0x338] sm:$0xff]
      %v384 = vld [vmem:[%s266 + $0x340] sm:$0xff]
      %v385 = vld [vmem:[%s266 + $0x348] sm:$0xff]
      %v386 = vld [vmem:[%s266 + $0x350] sm:$0xff]
      %v387 = vld [vmem:[%s266 + $0x358] sm:$0xff]
      %v388 = vld [vmem:[%s266 + $0x360] sm:$0xff]
      %v389 = vld [vmem:[%s266 + $0x368] sm:$0xff]
      %v390 = vld [vmem:[%s266 + $0x370] sm:$0xff]
      %v391 = vld [vmem:[%s266 + $0x378] sm:$0xff]
      %v392 = vld [vmem:[%s1] sm:$0xff]
      %v393 = vld [vmem:[%s1 + $0x8] sm:$0xff]
      %v394 = vld [vmem:[%s1 + $0x10] sm:$0xff]
      %v395 = vld [vmem:[%s1 + $0x18] sm:$0xff]
      %v396 = vld [vmem:[%s1 + $0x20] sm:$0xff]
      %v397 = vld [vmem:[%s1 + $0x28] sm:$0xff]
      %v398 = vld [vmem:[%s1 + $0x30] sm:$0xff]
      %v399 = vld [vmem:[%s1 + $0x38] sm:$0xff]
      %v400 = vld [vmem:[%s1 + $0x40] sm:$0xff]
      %v401 = vld [vmem:[%s1 + $0x48] sm:$0xff]
      %v402 = vld [vmem:[%s1 + $0x50] sm:$0xff]
      %v403 = vld [vmem:[%s1 + $0x58] sm:$0xff]
      %v404 = vld [vmem:[%s1 + $0x60] sm:$0xff]
      %v405 = vld [vmem:[%s1 + $0x68] sm:$0xff]
      %v406 = vld [vmem:[%s1 + $0x70] sm:$0xff]
      %v407 = vld [vmem:[%s1 + $0x78] sm:$0xff]
      %v408 = vld [vmem:[%s1 + $0x80] sm:$0xff]
      %v409 = vld [vmem:[%s1 + $0x88] sm:$0xff]
      %v410 = vld [vmem:[%s1 + $0x90] sm:$0xff]
      %v411 = vld [vmem:[%s1 + $0x98] sm:$0xff]
      %v412 = vld [vmem:[%s1 + $0xa0] sm:$0xff]
      %v413 = vld [vmem:[%s1 + $0xa8] sm:$0xff]
      %v414 = vld [vmem:[%s1 + $0xb0] sm:$0xff]
      %v415 = vld [vmem:[%s1 + $0xb8] sm:$0xff]
      %v416 = vld [vmem:[%s1 + $0xc0] sm:$0xff]
      %v417 = vld [vmem:[%s1 + $0xc8] sm:$0xff]
      %v418 = vld [vmem:[%s1 + $0xd0] sm:$0xff]
      %v419 = vld [vmem:[%s1 + $0xd8] sm:$0xff]
      %v420 = vld [vmem:[%s1 + $0xe0] sm:$0xff]
      %v421 = vld [vmem:[%s1 + $0xe8] sm:$0xff]
      %v422 = vld [vmem:[%s1 + $0xf0] sm:$0xff]
      %v423 = vld [vmem:[%s1 + $0xf8] sm:$0xff]
      %v424 = vld [vmem:[%s1 + $0x100] sm:$0xff]
      %v425 = vld [vmem:[%s1 + $0x108] sm:$0xff]
      %v426 = vld [vmem:[%s1 + $0x110] sm:$0xff]
      %v427 = vld [vmem:[%s1 + $0x118] sm:$0xff]
      %v428 = vld [vmem:[%s1 + $0x120] sm:$0xff]
      %v429 = vld [vmem:[%s1 + $0x128] sm:$0xff]
      %v430 = vld [vmem:[%s1 + $0x130] sm:$0xff]
      %v431 = vld [vmem:[%s1 + $0x138] sm:$0xff]
      %v432 = vld [vmem:[%s1 + $0x140] sm:$0xff]
      %v433 = vld [vmem:[%s1 + $0x148] sm:$0xff]
      %v434 = vld [vmem:[%s1 + $0x150] sm:$0xff]
      %v435 = vld [vmem:[%s1 + $0x158] sm:$0xff]
      %v436 = vld [vmem:[%s1 + $0x160] sm:$0xff]
      %v437 = vld [vmem:[%s1 + $0x168] sm:$0xff]
      %v438 = vld [vmem:[%s1 + $0x170] sm:$0xff]
      %v439 = vld [vmem:[%s1 + $0x178] sm:$0xff]
      %v440 = vld [vmem:[%s1 + $0x180] sm:$0xff]
      %v441 = vld [vmem:[%s1 + $0x188] sm:$0xff]
      %v442 = vld [vmem:[%s1 + $0x190] sm:$0xff]
      %v443 = vld [vmem:[%s1 + $0x198] sm:$0xff]
      %v444 = vld [vmem:[%s1 + $0x1a0] sm:$0xff]
      %v445 = vld [vmem:[%s1 + $0x1a8] sm:$0xff]
      %v446 = vld [vmem:[%s1 + $0x1b0] sm:$0xff]
      %v447 = vld [vmem:[%s1 + $0x1b8] sm:$0xff]
      %v448 = vld [vmem:[%s1 + $0x1c0] sm:$0xff]
      %v449 = vld [vmem:[%s1 + $0x1c8] sm:$0xff]
      %v450 = vld [vmem:[%s1 + $0x1d0] sm:$0xff]
      %v451 = vld [vmem:[%s1 + $0x1d8] sm:$0xff]
      %v452 = vld [vmem:[%s1 + $0x1e0] sm:$0xff]
      %v453 = vld [vmem:[%s1 + $0x1e8] sm:$0xff]
      %v454 = vld [vmem:[%s1 + $0x1f0] sm:$0xff]
      %v455 = vld [vmem:[%s1 + $0x1f8] sm:$0xff]
      %v456 = vld [vmem:[%s1 + $0x200] sm:$0xff]
      %v457 = vld [vmem:[%s1 + $0x208] sm:$0xff]
      %v458 = vld [vmem:[%s1 + $0x210] sm:$0xff]
      %v459 = vld [vmem:[%s1 + $0x218] sm:$0xff]
      %v460 = vld [vmem:[%s1 + $0x220] sm:$0xff]
      %v461 = vld [vmem:[%s1 + $0x228] sm:$0xff]
      %v462 = vld [vmem:[%s1 + $0x230] sm:$0xff]
      %v463 = vld [vmem:[%s1 + $0x238] sm:$0xff]
      %v464 = vld [vmem:[%s1 + $0x240] sm:$0xff]
      %v465 = vld [vmem:[%s1 + $0x248] sm:$0xff]
      %v466 = vld [vmem:[%s1 + $0x250] sm:$0xff]
      %v467 = vld [vmem:[%s1 + $0x258] sm:$0xff]
      %v468 = vld [vmem:[%s1 + $0x260] sm:$0xff]
      %v469 = vld [vmem:[%s1 + $0x268] sm:$0xff]
      %v470 = vld [vmem:[%s1 + $0x270] sm:$0xff]
      %v471 = vld [vmem:[%s1 + $0x278] sm:$0xff]
      %v472 = vld [vmem:[%s1 + $0x280] sm:$0xff]
      %v473 = vld [vmem:[%s1 + $0x288] sm:$0xff]
      %v474 = vld [vmem:[%s1 + $0x290] sm:$0xff]
      %v475 = vld [vmem:[%s1 + $0x298] sm:$0xff]
      %v476 = vld [vmem:[%s1 + $0x2a0] sm:$0xff]
      %v477 = vld [vmem:[%s1 + $0x2a8] sm:$0xff]
      %v478 = vld [vmem:[%s1 + $0x2b0] sm:$0xff]
      %v479 = vld [vmem:[%s1 + $0x2b8] sm:$0xff]
      %v480 = vld [vmem:[%s1 + $0x2c0] sm:$0xff]
      %v481 = vld [vmem:[%s1 + $0x2c8] sm:$0xff]
      %v482 = vld [vmem:[%s1 + $0x2d0] sm:$0xff]
      %v483 = vld [vmem:[%s1 + $0x2d8] sm:$0xff]
      %v484 = vld [vmem:[%s1 + $0x2e0] sm:$0xff]
      %v485 = vld [vmem:[%s1 + $0x2e8] sm:$0xff]
      %v486 = vld [vmem:[%s1 + $0x2f0] sm:$0xff]
      %v487 = vld [vmem:[%s1 + $0x2f8] sm:$0xff]
      %v488 = vld [vmem:[%s1 + $0x300] sm:$0xff]
      %v489 = vld [vmem:[%s1 + $0x308] sm:$0xff]
      %v490 = vld [vmem:[%s1 + $0x310] sm:$0xff]
      %v491 = vld [vmem:[%s1 + $0x318] sm:$0xff]
      %v492 = vld [vmem:[%s1 + $0x320] sm:$0xff]
      %v493 = vld [vmem:[%s1 + $0x328] sm:$0xff]
      %v494 = vld [vmem:[%s1 + $0x330] sm:$0xff]
      %v495 = vld [vmem:[%s1 + $0x338] sm:$0xff]
      %v496 = vld [vmem:[%s1 + $0x340] sm:$0xff]
      %v497 = vld [vmem:[%s1 + $0x348] sm:$0xff]
      %v498 = vld [vmem:[%s1 + $0x350] sm:$0xff]
      %v499 = vld [vmem:[%s1 + $0x358] sm:$0xff]
      %v500 = vld [vmem:[%s1 + $0x360] sm:$0xff]
      %v501 = vld [vmem:[%s1 + $0x368] sm:$0xff]
      %v502 = vld [vmem:[%s1 + $0x370] sm:$0xff]
      %v503 = vld [vmem:[%s1 + $0x378] sm:$0xff]
      %v504 = vld [vmem:[%s1 + $0x380] sm:$0xff]
      %v505 = vld [vmem:[%s1 + $0x388] sm:$0xff]
      %v506 = vld [vmem:[%s1 + $0x390] sm:$0xff]
      %v507 = vld [vmem:[%s1 + $0x398] sm:$0xff]
      %v508 = vld [vmem:[%s1 + $0x3a0] sm:$0xff]
      %v509 = vld [vmem:[%s1 + $0x3a8] sm:$0xff]
      %v510 = vld [vmem:[%s1 + $0x3b0] sm:$0xff]
      %v511 = vld [vmem:[%s1 + $0x3b8] sm:$0xff]
      %v512 = vld [vmem:[%s1 + $0x3c0] sm:$0xff]
      %v513 = vld [vmem:[%s1 + $0x3c8] sm:$0xff]
      %v514 = vld [vmem:[%s1 + $0x3d0] sm:$0xff]
      %v515 = vld [vmem:[%s1 + $0x3d8] sm:$0xff]
      %v516 = vld [vmem:[%s1 + $0x3e0] sm:$0xff]
      %v517 = vld [vmem:[%s1 + $0x3e8] sm:$0xff]
      %v518 = vld [vmem:[%s1 + $0x3f0] sm:$0xff]
      %v519 = vld [vmem:[%s1 + $0x3f8] sm:$0xff]
      %v520 = vld [vmem:[%s1 + $0x400] sm:$0xff]
      %v521 = vld [vmem:[%s1 + $0x408] sm:$0xff]
      %v522 = vld [vmem:[%s1 + $0x410] sm:$0xff]
      %v523 = vld [vmem:[%s1 + $0x418] sm:$0xff]
      %v524 = vld [vmem:[%s1 + $0x420] sm:$0xff]
      %v525 = vld [vmem:[%s1 + $0x428] sm:$0xff]
      %v526 = vld [vmem:[%s1 + $0x430] sm:$0xff]
      %v527 = vld [vmem:[%s1 + $0x438] sm:$0xff]
      %v528 = vld [vmem:[%s1 + $0x440] sm:$0xff]
      %v529 = vld [vmem:[%s1 + $0x448] sm:$0xff]
      %v530 = vld [vmem:[%s1 + $0x450] sm:$0xff]
      %v531 = vld [vmem:[%s1 + $0x458] sm:$0xff]
      %v532 = vld [vmem:[%s1 + $0x460] sm:$0xff]
      %v533 = vld [vmem:[%s1 + $0x468] sm:$0xff]
      %v534 = vld [vmem:[%s1 + $0x470] sm:$0xff]
      %v535 = vld [vmem:[%s1 + $0x478] sm:$0xff]
      %v536 = vld [vmem:[%s1 + $0x480] sm:$0xff]
      %v537 = vld [vmem:[%s1 + $0x488] sm:$0xff]
      %v538 = vld [vmem:[%s1 + $0x490] sm:$0xff]
      %v539 = vld [vmem:[%s1 + $0x498] sm:$0xff]
      %v540 = vld [vmem:[%s1 + $0x4a0] sm:$0xff]
      %v541 = vld [vmem:[%s1 + $0x4a8] sm:$0xff]
      %v542 = vld [vmem:[%s1 + $0x4b0] sm:$0xff]
      %v543 = vld [vmem:[%s1 + $0x4b8] sm:$0xff]
      %v544 = vld [vmem:[%s1 + $0x4c0] sm:$0xff]
      %v545 = vld [vmem:[%s1 + $0x4c8] sm:$0xff]
      %v546 = vld [vmem:[%s1 + $0x4d0] sm:$0xff]
      %v547 = vld [vmem:[%s1 + $0x4d8] sm:$0xff]
      %v548 = vld [vmem:[%s1 + $0x4e0] sm:$0xff]
      %v549 = vld [vmem:[%s1 + $0x4e8] sm:$0xff]
      %v550 = vld [vmem:[%s1 + $0x4f0] sm:$0xff]
      %v551 = vld [vmem:[%s1 + $0x4f8] sm:$0xff]
      %v552 = vld [vmem:[%s1 + $0x500] sm:$0xff]
      %v553 = vld [vmem:[%s1 + $0x508] sm:$0xff]
      %v554 = vld [vmem:[%s1 + $0x510] sm:$0xff]
      %v555 = vld [vmem:[%s1 + $0x518] sm:$0xff]
      %v556 = vld [vmem:[%s1 + $0x520] sm:$0xff]
      %v557 = vld [vmem:[%s1 + $0x528] sm:$0xff]
      %v558 = vld [vmem:[%s1 + $0x530] sm:$0xff]
      %v559 = vld [vmem:[%s1 + $0x538] sm:$0xff]
      %v560 = vld [vmem:[%s1 + $0x540] sm:$0xff]
      %v561 = vld [vmem:[%s1 + $0x548] sm:$0xff]
      %v562 = vld [vmem:[%s1 + $0x550] sm:$0xff]
      %v563 = vld [vmem:[%s1 + $0x558] sm:$0xff]
      %v564 = vld [vmem:[%s1 + $0x560] sm:$0xff]
      %v565 = vld [vmem:[%s1 + $0x568] sm:$0xff]
      %v566 = vld [vmem:[%s1 + $0x570] sm:$0xff]
      %v567 = vld [vmem:[%s1 + $0x578] sm:$0xff]
      %v568 = vld [vmem:[%s1 + $0x580] sm:$0xff]
      %v569 = vld [vmem:[%s1 + $0x588] sm:$0xff]
      %v570 = vld [vmem:[%s1 + $0x590] sm:$0xff]
      %v571 = vld [vmem:[%s1 + $0x598] sm:$0xff]
      %v572 = vld [vmem:[%s1 + $0x5a0] sm:$0xff]
      %v573 = vld [vmem:[%s1 + $0x5a8] sm:$0xff]
      %v574 = vld [vmem:[%s1 + $0x5b0] sm:$0xff]
      %v575 = vld [vmem:[%s1 + $0x5b8] sm:$0xff]
      %v576 = vld [vmem:[%s1 + $0x5c0] sm:$0xff]
      %v577 = vld [vmem:[%s1 + $0x5c8] sm:$0xff]
      %v578 = vld [vmem:[%s1 + $0x5d0] sm:$0xff]
      %v579 = vld [vmem:[%s1 + $0x5d8] sm:$0xff]
      %v580 = vld [vmem:[%s1 + $0x5e0] sm:$0xff]
      %v581 = vld [vmem:[%s1 + $0x5e8] sm:$0xff]
      %v582 = vld [vmem:[%s1 + $0x5f0] sm:$0xff]
      %v583 = vld [vmem:[%s1 + $0x5f8] sm:$0xff]
      %v584 = vld [vmem:[%s1 + $0x600] sm:$0xff]
      %v585 = vld [vmem:[%s1 + $0x608] sm:$0xff]
      %v586 = vld [vmem:[%s1 + $0x610] sm:$0xff]
      %v587 = vld [vmem:[%s1 + $0x618] sm:$0xff]
      %v588 = vld [vmem:[%s1 + $0x620] sm:$0xff]
      %v589 = vld [vmem:[%s1 + $0x628] sm:$0xff]
      %v590 = vld [vmem:[%s1 + $0x630] sm:$0xff]
      %v591 = vld [vmem:[%s1 + $0x638] sm:$0xff]
      %v592 = vld [vmem:[%s1 + $0x640] sm:$0xff]
      %v593 = vld [vmem:[%s1 + $0x648] sm:$0xff]
      %v594 = vld [vmem:[%s1 + $0x650] sm:$0xff]
      %v595 = vld [vmem:[%s1 + $0x658] sm:$0xff]
      %v596 = vld [vmem:[%s1 + $0x660] sm:$0xff]
      %v597 = vld [vmem:[%s1 + $0x668] sm:$0xff]
      %v598 = vld [vmem:[%s1 + $0x670] sm:$0xff]
      %v599 = vld [vmem:[%s1 + $0x678] sm:$0xff]
      %v600 = vld [vmem:[%s1 + $0x680] sm:$0xff]
      %v601 = vld [vmem:[%s1 + $0x688] sm:$0xff]
      %v602 = vld [vmem:[%s1 + $0x690] sm:$0xff]
      %v603 = vld [vmem:[%s1 + $0x698] sm:$0xff]
      %v604 = vld [vmem:[%s1 + $0x6a0] sm:$0xff]
      %v605 = vld [vmem:[%s1 + $0x6a8] sm:$0xff]
      %v606 = vld [vmem:[%s1 + $0x6b0] sm:$0xff]
      %v607 = vld [vmem:[%s1 + $0x6b8] sm:$0xff]
      %v608 = vld [vmem:[%s1 + $0x6c0] sm:$0xff]
      %v609 = vld [vmem:[%s1 + $0x6c8] sm:$0xff]
      %v610 = vld [vmem:[%s1 + $0x6d0] sm:$0xff]
      %v611 = vld [vmem:[%s1 + $0x6d8] sm:$0xff]
      %v612 = vld [vmem:[%s1 + $0x6e0] sm:$0xff]
      %v613 = vld [vmem:[%s1 + $0x6e8] sm:$0xff]
      %v614 = vld [vmem:[%s1 + $0x6f0] sm:$0xff]
      %v615 = vld [vmem:[%s1 + $0x6f8] sm:$0xff]
      %v616 = vld [vmem:[%s1 + $0x700] sm:$0xff]
      %v617 = vld [vmem:[%s1 + $0x708] sm:$0xff]
      %v618 = vld [vmem:[%s1 + $0x710] sm:$0xff]
      %v619 = vld [vmem:[%s1 + $0x718] sm:$0xff]
      %v620 = vld [vmem:[%s1 + $0x720] sm:$0xff]
      %v621 = vld [vmem:[%s1 + $0x728] sm:$0xff]
      %v622 = vld [vmem:[%s1 + $0x730] sm:$0xff]
      %v623 = vld [vmem:[%s1 + $0x738] sm:$0xff]
      %v624 = vld [vmem:[%s1 + $0x740] sm:$0xff]
      %v625 = vld [vmem:[%s1 + $0x748] sm:$0xff]
      %v626 = vld [vmem:[%s1 + $0x750] sm:$0xff]
      %v627 = vld [vmem:[%s1 + $0x758] sm:$0xff]
      %v628 = vld [vmem:[%s1 + $0x760] sm:$0xff]
      %v629 = vld [vmem:[%s1 + $0x768] sm:$0xff]
      %v630 = vld [vmem:[%s1 + $0x770] sm:$0xff]
      %v631 = vld [vmem:[%s1 + $0x778] sm:$0xff]
      %v632 = vld [vmem:[%s1 + $0x780] sm:$0xff]
      %v633 = vld [vmem:[%s1 + $0x788] sm:$0xff]
      %v634 = vld [vmem:[%s1 + $0x790] sm:$0xff]
      %v635 = vld [vmem:[%s1 + $0x798] sm:$0xff]
      %v636 = vld [vmem:[%s1 + $0x7a0] sm:$0xff]
      %v637 = vld [vmem:[%s1 + $0x7a8] sm:$0xff]
      %v638 = vld [vmem:[%s1 + $0x7b0] sm:$0xff]
      %v639 = vld [vmem:[%s1 + $0x7b8] sm:$0xff]
      %v640 = vld [vmem:[%s1 + $0x7c0] sm:$0xff]
      %v641 = vld [vmem:[%s1 + $0x7c8] sm:$0xff]
      %v642 = vld [vmem:[%s1 + $0x7d0] sm:$0xff]
      %v643 = vld [vmem:[%s1 + $0x7d8] sm:$0xff]
      %v644 = vld [vmem:[%s1 + $0x7e0] sm:$0xff]
      %v645 = vld [vmem:[%s1 + $0x7e8] sm:$0xff]
      %v646 = vld [vmem:[%s1 + $0x7f0] sm:$0xff]
      %v647 = vld [vmem:[%s1 + $0x7f8] sm:$0xff]
      %v648 = vld [vmem:[%s1 + $0x800] sm:$0xff]
      %v649 = vld [vmem:[%s1 + $0x808] sm:$0xff]
      %v650 = vld [vmem:[%s1 + $0x810] sm:$0xff]
      %v651 = vld [vmem:[%s1 + $0x818] sm:$0xff]
      %v652 = vld [vmem:[%s1 + $0x820] sm:$0xff]
      %v653 = vld [vmem:[%s1 + $0x828] sm:$0xff]
      %v654 = vld [vmem:[%s1 + $0x830] sm:$0xff]
      %v655 = vld [vmem:[%s1 + $0x838] sm:$0xff]
      %v656 = vld [vmem:[%s1 + $0x840] sm:$0xff]
      %v657 = vld [vmem:[%s1 + $0x848] sm:$0xff]
      %v658 = vld [vmem:[%s1 + $0x850] sm:$0xff]
      %v659 = vld [vmem:[%s1 + $0x858] sm:$0xff]
      %v660 = vld [vmem:[%s1 + $0x860] sm:$0xff]
      %v661 = vld [vmem:[%s1 + $0x868] sm:$0xff]
      %v662 = vld [vmem:[%s1 + $0x870] sm:$0xff]
      %v663 = vld [vmem:[%s1 + $0x878] sm:$0xff]
      %v664 = vld [vmem:[%s1 + $0x880] sm:$0xff]
      %v665 = vld [vmem:[%s1 + $0x888] sm:$0xff]
      %v666 = vld [vmem:[%s1 + $0x890] sm:$0xff]
      %v667 = vld [vmem:[%s1 + $0x898] sm:$0xff]
      %v668 = vld [vmem:[%s1 + $0x8a0] sm:$0xff]
      %v669 = vld [vmem:[%s1 + $0x8a8] sm:$0xff]
      %v670 = vld [vmem:[%s1 + $0x8b0] sm:$0xff]
      %v671 = vld [vmem:[%s1 + $0x8b8] sm:$0xff]
      %v672 = vld [vmem:[%s1 + $0x8c0] sm:$0xff]
      %v673 = vld [vmem:[%s1 + $0x8c8] sm:$0xff]
      %v674 = vld [vmem:[%s1 + $0x8d0] sm:$0xff]
      %v675 = vld [vmem:[%s1 + $0x8d8] sm:$0xff]
      %v676 = vld [vmem:[%s1 + $0x8e0] sm:$0xff]
      %v677 = vld [vmem:[%s1 + $0x8e8] sm:$0xff]
      %v678 = vld [vmem:[%s1 + $0x8f0] sm:$0xff]
      %v679 = vld [vmem:[%s1 + $0x8f8] sm:$0xff]
      %v680 = vld [vmem:[%s1 + $0x900] sm:$0xff]
      %v681 = vld [vmem:[%s1 + $0x908] sm:$0xff]
      %v682 = vld [vmem:[%s1 + $0x910] sm:$0xff]
      %v683 = vld [vmem:[%s1 + $0x918] sm:$0xff]
      %v684 = vld [vmem:[%s1 + $0x920] sm:$0xff]
      %v685 = vld [vmem:[%s1 + $0x928] sm:$0xff]
      %v686 = vld [vmem:[%s1 + $0x930] sm:$0xff]
      %v687 = vld [vmem:[%s1 + $0x938] sm:$0xff]
      %v688 = vld [vmem:[%s1 + $0x940] sm:$0xff]
      %v689 = vld [vmem:[%s1 + $0x948] sm:$0xff]
      %v690 = vld [vmem:[%s1 + $0x950] sm:$0xff]
      %v691 = vld [vmem:[%s1 + $0x958] sm:$0xff]
      %v692 = vld [vmem:[%s1 + $0x960] sm:$0xff]
      %v693 = vld [vmem:[%s1 + $0x968] sm:$0xff]
      %v694 = vld [vmem:[%s1 + $0x970] sm:$0xff]
      %v695 = vld [vmem:[%s1 + $0x978] sm:$0xff]
      %v696 = vld [vmem:[%s1 + $0x980] sm:$0xff]
      %v697 = vld [vmem:[%s1 + $0x988] sm:$0xff]
      %v698 = vld [vmem:[%s1 + $0x990] sm:$0xff]
      %v699 = vld [vmem:[%s1 + $0x998] sm:$0xff]
      %v700 = vld [vmem:[%s1 + $0x9a0] sm:$0xff]
      %v701 = vld [vmem:[%s1 + $0x9a8] sm:$0xff]
      %v702 = vld [vmem:[%s1 + $0x9b0] sm:$0xff]
      %v703 = vld [vmem:[%s1 + $0x9b8] sm:$0xff]
      %v704 = vld [vmem:[%s1 + $0x9c0] sm:$0xff]
      %v705 = vld [vmem:[%s1 + $0x9c8] sm:$0xff]
      %v706 = vld [vmem:[%s1 + $0x9d0] sm:$0xff]
      %v707 = vld [vmem:[%s1 + $0x9d8] sm:$0xff]
      %v708 = vld [vmem:[%s1 + $0x9e0] sm:$0xff]
      %v709 = vld [vmem:[%s1 + $0x9e8] sm:$0xff]
      %v710 = vld [vmem:[%s1 + $0x9f0] sm:$0xff]
      %v711 = vld [vmem:[%s1 + $0x9f8] sm:$0xff]
      %v712 = vld [vmem:[%s1 + $0xa00] sm:$0xff]
      %v713 = vld [vmem:[%s1 + $0xa08] sm:$0xff]
      %v714 = vld [vmem:[%s1 + $0xa10] sm:$0xff]
      %v715 = vld [vmem:[%s1 + $0xa18] sm:$0xff]
      %v716 = vld [vmem:[%s1 + $0xa20] sm:$0xff]
      %v717 = vld [vmem:[%s1 + $0xa28] sm:$0xff]
      %v718 = vld [vmem:[%s1 + $0xa30] sm:$0xff]
      %v719 = vld [vmem:[%s1 + $0xa38] sm:$0xff]
      %v720 = vld [vmem:[%s1 + $0xa40] sm:$0xff]
      %v721 = vld [vmem:[%s1 + $0xa48] sm:$0xff]
      %v722 = vld [vmem:[%s1 + $0xa50] sm:$0xff]
      %v723 = vld [vmem:[%s1 + $0xa58] sm:$0xff]
      %v724 = vld [vmem:[%s1 + $0xa60] sm:$0xff]
      %v725 = vld [vmem:[%s1 + $0xa68] sm:$0xff]
      %v726 = vld [vmem:[%s1 + $0xa70] sm:$0xff]
      %v727 = vld [vmem:[%s1 + $0xa78] sm:$0xff]
      %v728 = vld [vmem:[%s1 + $0xa80] sm:$0xff]
      %v729 = vld [vmem:[%s1 + $0xa88] sm:$0xff]
      %v730 = vld [vmem:[%s1 + $0xa90] sm:$0xff]
      %v731 = vld [vmem:[%s1 + $0xa98] sm:$0xff]
      %v732 = vld [vmem:[%s1 + $0xaa0] sm:$0xff]
      %v733 = vld [vmem:[%s1 + $0xaa8] sm:$0xff]
      %v734 = vld [vmem:[%s1 + $0xab0] sm:$0xff]
      %v735 = vld [vmem:[%s1 + $0xab8] sm:$0xff]
      %v736 = vld [vmem:[%s1 + $0xac0] sm:$0xff]
      %v737 = vld [vmem:[%s1 + $0xac8] sm:$0xff]
      %v738 = vld [vmem:[%s1 + $0xad0] sm:$0xff]
      %v739 = vld [vmem:[%s1 + $0xad8] sm:$0xff]
      %v740 = vld [vmem:[%s1 + $0xae0] sm:$0xff]
      %v741 = vld [vmem:[%s1 + $0xae8] sm:$0xff]
      %v742 = vld [vmem:[%s1 + $0xaf0] sm:$0xff]
      %v743 = vld [vmem:[%s1 + $0xaf8] sm:$0xff]
      %v744 = vld [vmem:[%s1 + $0xb00] sm:$0xff]
      %v745 = vld [vmem:[%s1 + $0xb08] sm:$0xff]
      %v746 = vld [vmem:[%s1 + $0xb10] sm:$0xff]
      %v747 = vld [vmem:[%s1 + $0xb18] sm:$0xff]
      %v748 = vld [vmem:[%s1 + $0xb20] sm:$0xff]
      %v749 = vld [vmem:[%s1 + $0xb28] sm:$0xff]
      %v750 = vld [vmem:[%s1 + $0xb30] sm:$0xff]
      %v751 = vld [vmem:[%s1 + $0xb38] sm:$0xff]
      %v752 = vld [vmem:[%s1 + $0xb40] sm:$0xff]
      %v753 = vld [vmem:[%s1 + $0xb48] sm:$0xff]
      %v754 = vld [vmem:[%s1 + $0xb50] sm:$0xff]
      %v755 = vld [vmem:[%s1 + $0xb58] sm:$0xff]
      %v756 = vld [vmem:[%s1 + $0xb60] sm:$0xff]
      %v757 = vld [vmem:[%s1 + $0xb68] sm:$0xff]
      %v758 = vld [vmem:[%s1 + $0xb70] sm:$0xff]
      %v759 = vld [vmem:[%s1 + $0xb78] sm:$0xff]
      %v760 = vld [vmem:[%s1 + $0xb80] sm:$0xff]
      %v761 = vld [vmem:[%s1 + $0xb88] sm:$0xff]
      %v762 = vld [vmem:[%s1 + $0xb90] sm:$0xff]
      %v763 = vld [vmem:[%s1 + $0xb98] sm:$0xff]
      %v764 = vld [vmem:[%s1 + $0xba0] sm:$0xff]
      %v765 = vld [vmem:[%s1 + $0xba8] sm:$0xff]
      %v766 = vld [vmem:[%s1 + $0xbb0] sm:$0xff]
      %v767 = vld [vmem:[%s1 + $0xbb8] sm:$0xff]
      %v768 = vld [vmem:[%s1 + $0xbc0] sm:$0xff]
      %v769 = vld [vmem:[%s1 + $0xbc8] sm:$0xff]
      %v770 = vld [vmem:[%s1 + $0xbd0] sm:$0xff]
      %v771 = vld [vmem:[%s1 + $0xbd8] sm:$0xff]
      %v772 = vld [vmem:[%s1 + $0xbe0] sm:$0xff]
      %v773 = vld [vmem:[%s1 + $0xbe8] sm:$0xff]
      %v774 = vld [vmem:[%s1 + $0xbf0] sm:$0xff]
      %v775 = vld [vmem:[%s1 + $0xbf8] sm:$0xff]
      %v776 = vld [vmem:[%s1 + $0xc00] sm:$0xff]
      %v777 = vld [vmem:[%s1 + $0xc08] sm:$0xff]
      %v778 = vld [vmem:[%s1 + $0xc10] sm:$0xff]
      %v779 = vld [vmem:[%s1 + $0xc18] sm:$0xff]
      %v780 = vld [vmem:[%s1 + $0xc20] sm:$0xff]
      %v781 = vld [vmem:[%s1 + $0xc28] sm:$0xff]
      %v782 = vld [vmem:[%s1 + $0xc30] sm:$0xff]
      %v783 = vld [vmem:[%s1 + $0xc38] sm:$0xff]
      %v784 = vld [vmem:[%s2] sm:$0xf]
      %v786 = vlaneseq
      %v787 = vshrl.u32 %v786, 7
      %v788 = vsub.s32 0, %v787
      %v789 = vrot.slane %v784, %v788
      %v790 = vlaneseq
      %v791 = vshrl.u32 %v790, 7
      %v792 = vsub.s32 1, %v791
      %v793 = vrot.slane %v784, %v792
      %v794 = vlaneseq
      %v795 = vshrl.u32 %v794, 7
      %v796 = vsub.s32 2, %v795
      %v797 = vrot.slane %v784, %v796
      %v798 = vlaneseq
      %v799 = vshrl.u32 %v798, 7
      %v800 = vsub.s32 3, %v799
      %v801 = vrot.slane %v784, %v800
      %vm806 = vcmask 130048
      %v808 = vsel %vm806, %v286, 0
      %v811 = vsel %vm806, %v293, 0
      %v814 = vsel %vm806, %v300, 0
      %v817 = vsel %vm806, %v307, 0
      %v820 = vsel %vm806, %v314, 0
      %v823 = vsel %vm806, %v321, 0
      %v826 = vsel %vm806, %v328, 0
      %v829 = vsel %vm806, %v335, 0
      %v832 = vsel %vm806, %v342, 0
      %v835 = vsel %vm806, %v349, 0
      %v838 = vsel %vm806, %v356, 0
      %v841 = vsel %vm806, %v363, 0
      %v844 = vsel %vm806, %v370, 0
      %v847 = vsel %vm806, %v377, 0
      %v850 = vsel %vm806, %v384, 0
      %v853 = vsel %vm806, %v391, 0
      %855 = vmatprep.subr.mxu0 %v453
      %856 = vmatpush1.msra.mxu0 %v452
      %857 = vmatprep.subr.mxu0 %v449
      %858 = vmatpush1.msra.mxu0 %v448
      %859 = vmatprep.subr.mxu0 %v445
      %860 = vmatpush1.msra.mxu0 %v444
      %861 = vmatprep.subr.mxu0 %v441
      %862 = vmatpush1.msra.mxu0 %v440
      %863 = vmatprep.subr.mxu0 %v437
      %864 = vmatpush1.msra.mxu0 %v436
      %865 = vmatprep.subr.mxu0 %v433
      %866 = vmatpush1.msra.mxu0 %v432
      %867 = vmatprep.subr.mxu0 %v429
      %868 = vmatpush1.msra.mxu0 %v428
      %869 = vmatprep.subr.mxu0 %v425
      %870 = vmatpush1.msra.mxu0 %v424
      %871 = vmatprep.subr.mxu0 %v421
      %872 = vmatpush1.msra.mxu0 %v420
      %873 = vmatprep.subr.mxu0 %v417
      %874 = vmatpush1.msra.mxu0 %v416
      %875 = vmatprep.subr.mxu0 %v413
      %876 = vmatpush1.msra.mxu0 %v412
      %877 = vmatprep.subr.mxu0 %v409
      %878 = vmatpush1.msra.mxu0 %v408
      %879 = vmatprep.subr.mxu0 %v405
      %880 = vmatpush1.msra.mxu0 %v404
      %881 = vmatprep.subr.mxu0 %v401
      %882 = vmatpush1.msra.mxu0 %v400
      %883 = vmatprep.subr.mxu0 %v397
      %884 = vmatpush1.msra.mxu0 %v396
      %885 = vmatprep.subr.mxu0 %v393
      %886 = vmatpush1.msra.mxu0 %v392
      %887 = vmatprep.subr.mxu0 %v517
      %888 = vmatpush2.msra.mxu0 %v516
      %889 = vmatprep.subr.mxu0 %v513
      %890 = vmatpush2.msra.mxu0 %v512
      %891 = vmatprep.subr.mxu0 %v509
      %892 = vmatpush2.msra.mxu0 %v508
      %893 = vmatprep.subr.mxu0 %v505
      %894 = vmatpush2.msra.mxu0 %v504
      %895 = vmatprep.subr.mxu0 %v501
      %896 = vmatpush2.msra.mxu0 %v500
      %897 = vmatprep.subr.mxu0 %v497
      %898 = vmatpush2.msra.mxu0 %v496
      %899 = vmatprep.subr.mxu0 %v493
      %900 = vmatpush2.msra.mxu0 %v492
      %901 = vmatprep.subr.mxu0 %v489
      %902 = vmatpush2.msra.mxu0 %v488
      %903 = vmatprep.subr.mxu0 %v485
      %904 = vmatpush2.msra.mxu0 %v484
      %905 = vmatprep.subr.mxu0 %v481
      %906 = vmatpush2.msra.mxu0 %v480
      %907 = vmatprep.subr.mxu0 %v477
      %908 = vmatpush2.msra.mxu0 %v476
      %909 = vmatprep.subr.mxu0 %v473
      %910 = vmatpush2.msra.mxu0 %v472
      %911 = vmatprep.subr.mxu0 %v469
      %912 = vmatpush2.msra.mxu0 %v468
      %913 = vmatprep.subr.mxu0 %v465
      %914 = vmatpush2.msra.mxu0 %v464
      %915 = vmatprep.subr.mxu0 %v461
      %916 = vmatpush2.msra.mxu0 %v460
      %917 = vmatprep.subr.mxu0 %v457
      %918 = vmatpush2.msra.mxu0 %v456
      %919 = vmatprep.mubr.f32.mxu0 %v281
      %920 = vmatmul.mubr.f32.gmra.mxu0 %v280
      %v921 = vpop.f32.mrf.mxu0
      %v922 = vadd.f32 %v789, %v921
      %v923 = vpop.f32.mrf.mxu0
      %v924 = vadd.f32 %v793, %v923
      %925 = vmatprep.mubr.f32.mxu0 %v288
      %926 = vmatmul.mubr.f32.gmra.mxu0 %v287
      %v927 = vpop.f32.mrf.mxu0
      %v928 = vadd.f32 %v789, %v927
      %v929 = vpop.f32.mrf.mxu0
      %v930 = vadd.f32 %v793, %v929
      %931 = vmatprep.mubr.f32.mxu0 %v295
      %932 = vmatmul.mubr.f32.gmra.mxu0 %v294
      %v933 = vpop.f32.mrf.mxu0
      %v934 = vadd.f32 %v789, %v933
      %v935 = vpop.f32.mrf.mxu0
      %v936 = vadd.f32 %v793, %v935
      %937 = vmatprep.mubr.f32.mxu0 %v302
      %938 = vmatmul.mubr.f32.gmra.mxu0 %v301
      %v939 = vpop.f32.mrf.mxu0
      %v940 = vadd.f32 %v789, %v939
      %v941 = vpop.f32.mrf.mxu0
      %v942 = vadd.f32 %v793, %v941
      %943 = vmatprep.mubr.f32.mxu0 %v309
      %944 = vmatmul.mubr.f32.gmra.mxu0 %v308
      %v945 = vpop.f32.mrf.mxu0
      %v946 = vadd.f32 %v789, %v945
      %v947 = vpop.f32.mrf.mxu0
      %v948 = vadd.f32 %v793, %v947
      %949 = vmatprep.mubr.f32.mxu0 %v316
      %950 = vmatmul.mubr.f32.gmra.mxu0 %v315
      %v951 = vpop.f32.mrf.mxu0
      %v952 = vadd.f32 %v789, %v951
      %v953 = vpop.f32.mrf.mxu0
      %v954 = vadd.f32 %v793, %v953
      %955 = vmatprep.mubr.f32.mxu0 %v323
      %956 = vmatmul.mubr.f32.gmra.mxu0 %v322
      %v957 = vpop.f32.mrf.mxu0
      %v958 = vadd.f32 %v789, %v957
      %v959 = vpop.f32.mrf.mxu0
      %v960 = vadd.f32 %v793, %v959
      %961 = vmatprep.mubr.f32.mxu0 %v330
      %962 = vmatmul.mubr.f32.gmra.mxu0 %v329
      %v963 = vpop.f32.mrf.mxu0
      %v964 = vadd.f32 %v789, %v963
      %v965 = vpop.f32.mrf.mxu0
      %v966 = vadd.f32 %v793, %v965
      %967 = vmatprep.mubr.f32.mxu0 %v337
      %968 = vmatmul.mubr.f32.gmra.mxu0 %v336
      %v969 = vpop.f32.mrf.mxu0
      %v970 = vadd.f32 %v789, %v969
      %v971 = vpop.f32.mrf.mxu0
      %v972 = vadd.f32 %v793, %v971
      %973 = vmatprep.mubr.f32.mxu0 %v344
      %974 = vmatmul.mubr.f32.gmra.mxu0 %v343
      %v975 = vpop.f32.mrf.mxu0
      %v976 = vadd.f32 %v789, %v975
      %v977 = vpop.f32.mrf.mxu0
      %v978 = vadd.f32 %v793, %v977
      %979 = vmatprep.mubr.f32.mxu0 %v351
      %980 = vmatmul.mubr.f32.gmra.mxu0 %v350
      %v981 = vpop.f32.mrf.mxu0
      %v982 = vadd.f32 %v789, %v981
      %v983 = vpop.f32.mrf.mxu0
      %v984 = vadd.f32 %v793, %v983
      %985 = vmatprep.mubr.f32.mxu0 %v358
      %986 = vmatmul.mubr.f32.gmra.mxu0 %v357
      %v987 = vpop.f32.mrf.mxu0
      %v988 = vadd.f32 %v789, %v987
      %v989 = vpop.f32.mrf.mxu0
      %v990 = vadd.f32 %v793, %v989
      %991 = vmatprep.mubr.f32.mxu0 %v365
      %992 = vmatmul.mubr.f32.gmra.mxu0 %v364
      %v993 = vpop.f32.mrf.mxu0
      %v994 = vadd.f32 %v789, %v993
      %v995 = vpop.f32.mrf.mxu0
      %v996 = vadd.f32 %v793, %v995
      %997 = vmatprep.mubr.f32.mxu0 %v372
      %998 = vmatmul.mubr.f32.gmra.mxu0 %v371
      %v999 = vpop.f32.mrf.mxu0
      %v1000 = vadd.f32 %v789, %v999
      %v1001 = vpop.f32.mrf.mxu0
      %v1002 = vadd.f32 %v793, %v1001
      %1003 = vmatprep.mubr.f32.mxu0 %v379
      %1004 = vmatmul.mubr.f32.gmra.mxu0 %v378
      %v1005 = vpop.f32.mrf.mxu0
      %v1006 = vadd.f32 %v789, %v1005
      %v1007 = vpop.f32.mrf.mxu0
      %v1008 = vadd.f32 %v793, %v1007
      %1009 = vmatprep.mubr.f32.mxu0 %v386
      %1010 = vmatmul.mubr.f32.gmra.mxu0 %v385
      %v1011 = vpop.f32.mrf.mxu0
      %v1012 = vadd.f32 %v789, %v1011
      %v1013 = vpop.f32.mrf.mxu0
      %v1014 = vadd.f32 %v793, %v1013
      %1015 = vdwg.mxu0
      %1016 = vmatprep.subr.mxu0 %v581
      %1017 = vmatpush1.msra.mxu0 %v580
      %1018 = vmatprep.subr.mxu0 %v577
      %1019 = vmatpush1.msra.mxu0 %v576
      %1020 = vmatprep.subr.mxu0 %v573
      %1021 = vmatpush1.msra.mxu0 %v572
      %1022 = vmatprep.subr.mxu0 %v569
      %1023 = vmatpush1.msra.mxu0 %v568
      %1024 = vmatprep.subr.mxu0 %v565
      %1025 = vmatpush1.msra.mxu0 %v564
      %1026 = vmatprep.subr.mxu0 %v561
      %1027 = vmatpush1.msra.mxu0 %v560
      %1028 = vmatprep.subr.mxu0 %v557
      %1029 = vmatpush1.msra.mxu0 %v556
      %1030 = vmatprep.subr.mxu0 %v553
      %1031 = vmatpush1.msra.mxu0 %v552
      %1032 = vmatprep.subr.mxu0 %v549
      %1033 = vmatpush1.msra.mxu0 %v548
      %1034 = vmatprep.subr.mxu0 %v545
      %1035 = vmatpush1.msra.mxu0 %v544
      %1036 = vmatprep.subr.mxu0 %v541
      %1037 = vmatpush1.msra.mxu0 %v540
      %1038 = vmatprep.subr.mxu0 %v537
      %1039 = vmatpush1.msra.mxu0 %v536
      %1040 = vmatprep.subr.mxu0 %v533
      %1041 = vmatpush1.msra.mxu0 %v532
      %1042 = vmatprep.subr.mxu0 %v529
      %1043 = vmatpush1.msra.mxu0 %v528
      %1044 = vmatprep.subr.mxu0 %v525
      %1045 = vmatpush1.msra.mxu0 %v524
      %1046 = vmatprep.subr.mxu0 %v521
      %1047 = vmatpush1.msra.mxu0 %v520
      %1048 = vmatprep.subr.mxu0 %v645
      %1049 = vmatpush2.msra.mxu0 %v644
      %1050 = vmatprep.subr.mxu0 %v641
      %1051 = vmatpush2.msra.mxu0 %v640
      %1052 = vmatprep.subr.mxu0 %v637
      %1053 = vmatpush2.msra.mxu0 %v636
      %1054 = vmatprep.subr.mxu0 %v633
      %1055 = vmatpush2.msra.mxu0 %v632
      %1056 = vmatprep.subr.mxu0 %v629
      %1057 = vmatpush2.msra.mxu0 %v628
      %1058 = vmatprep.subr.mxu0 %v625
      %1059 = vmatpush2.msra.mxu0 %v624
      %1060 = vmatprep.subr.mxu0 %v621
      %1061 = vmatpush2.msra.mxu0 %v620
      %1062 = vmatprep.subr.mxu0 %v617
      %1063 = vmatpush2.msra.mxu0 %v616
      %1064 = vmatprep.subr.mxu0 %v613
      %1065 = vmatpush2.msra.mxu0 %v612
      %1066 = vmatprep.subr.mxu0 %v609
      %1067 = vmatpush2.msra.mxu0 %v608
      %1068 = vmatprep.subr.mxu0 %v605
      %1069 = vmatpush2.msra.mxu0 %v604
      %1070 = vmatprep.subr.mxu0 %v601
      %1071 = vmatpush2.msra.mxu0 %v600
      %1072 = vmatprep.subr.mxu0 %v597
      %1073 = vmatpush2.msra.mxu0 %v596
      %1074 = vmatprep.subr.mxu0 %v593
      %1075 = vmatpush2.msra.mxu0 %v592
      %1076 = vmatprep.subr.mxu0 %v589
      %1077 = vmatpush2.msra.mxu0 %v588
      %1078 = vmatprep.subr.mxu0 %v585
      %1079 = vmatpush2.msra.mxu0 %v584
      %1080 = vmatprep.mubr.f32.mxu0 %v283
      %1081 = vmatmul.mubr.f32.gmra.mxu0 %v282
      %v1082 = vpop.f32.mrf.mxu0
      %v1083 = vadd.f32 %v922, %v1082
      %v1084 = vpop.f32.mrf.mxu0
      %v1085 = vadd.f32 %v924, %v1084
      %1086 = vmatprep.mubr.f32.mxu0 %v290
      %1087 = vmatmul.mubr.f32.gmra.mxu0 %v289
      %v1088 = vpop.f32.mrf.mxu0
      %v1089 = vadd.f32 %v928, %v1088
      %v1090 = vpop.f32.mrf.mxu0
      %v1091 = vadd.f32 %v930, %v1090
      %1092 = vmatprep.mubr.f32.mxu0 %v297
      %1093 = vmatmul.mubr.f32.gmra.mxu0 %v296
      %v1094 = vpop.f32.mrf.mxu0
      %v1095 = vadd.f32 %v934, %v1094
      %v1096 = vpop.f32.mrf.mxu0
      %v1097 = vadd.f32 %v936, %v1096
      %1098 = vmatprep.mubr.f32.mxu0 %v304
      %1099 = vmatmul.mubr.f32.gmra.mxu0 %v303
      %v1100 = vpop.f32.mrf.mxu0
      %v1101 = vadd.f32 %v940, %v1100
      %v1102 = vpop.f32.mrf.mxu0
      %v1103 = vadd.f32 %v942, %v1102
      %1104 = vmatprep.mubr.f32.mxu0 %v311
      %1105 = vmatmul.mubr.f32.gmra.mxu0 %v310
      %v1106 = vpop.f32.mrf.mxu0
      %v1107 = vadd.f32 %v946, %v1106
      %v1108 = vpop.f32.mrf.mxu0
      %v1109 = vadd.f32 %v948, %v1108
      %1110 = vmatprep.mubr.f32.mxu0 %v318
      %1111 = vmatmul.mubr.f32.gmra.mxu0 %v317
      %v1112 = vpop.f32.mrf.mxu0
      %v1113 = vadd.f32 %v952, %v1112
      %v1114 = vpop.f32.mrf.mxu0
      %v1115 = vadd.f32 %v954, %v1114
      %1116 = vmatprep.mubr.f32.mxu0 %v325
      %1117 = vmatmul.mubr.f32.gmra.mxu0 %v324
      %v1118 = vpop.f32.mrf.mxu0
      %v1119 = vadd.f32 %v958, %v1118
      %v1120 = vpop.f32.mrf.mxu0
      %v1121 = vadd.f32 %v960, %v1120
      %1122 = vmatprep.mubr.f32.mxu0 %v332
      %1123 = vmatmul.mubr.f32.gmra.mxu0 %v331
      %v1124 = vpop.f32.mrf.mxu0
      %v1125 = vadd.f32 %v964, %v1124
      %v1126 = vpop.f32.mrf.mxu0
      %v1127 = vadd.f32 %v966, %v1126
      %1128 = vmatprep.mubr.f32.mxu0 %v339
      %1129 = vmatmul.mubr.f32.gmra.mxu0 %v338
      %v1130 = vpop.f32.mrf.mxu0
      %v1131 = vadd.f32 %v970, %v1130
      %v1132 = vpop.f32.mrf.mxu0
      %v1133 = vadd.f32 %v972, %v1132
      %1134 = vmatprep.mubr.f32.mxu0 %v346
      %1135 = vmatmul.mubr.f32.gmra.mxu0 %v345
      %v1136 = vpop.f32.mrf.mxu0
      %v1137 = vadd.f32 %v976, %v1136
      %v1138 = vpop.f32.mrf.mxu0
      %v1139 = vadd.f32 %v978, %v1138
      %1140 = vmatprep.mubr.f32.mxu0 %v353
      %1141 = vmatmul.mubr.f32.gmra.mxu0 %v352
      %v1142 = vpop.f32.mrf.mxu0
      %v1143 = vadd.f32 %v982, %v1142
      %v1144 = vpop.f32.mrf.mxu0
      %v1145 = vadd.f32 %v984, %v1144
      %1146 = vmatprep.mubr.f32.mxu0 %v360
      %1147 = vmatmul.mubr.f32.gmra.mxu0 %v359
      %v1148 = vpop.f32.mrf.mxu0
      %v1149 = vadd.f32 %v988, %v1148
      %v1150 = vpop.f32.mrf.mxu0
      %v1151 = vadd.f32 %v990, %v1150
      %1152 = vmatprep.mubr.f32.mxu0 %v367
      %1153 = vmatmul.mubr.f32.gmra.mxu0 %v366
      %v1154 = vpop.f32.mrf.mxu0
      %v1155 = vadd.f32 %v994, %v1154
      %v1156 = vpop.f32.mrf.mxu0
      %v1157 = vadd.f32 %v996, %v1156
      %1158 = vmatprep.mubr.f32.mxu0 %v374
      %1159 = vmatmul.mubr.f32.gmra.mxu0 %v373
      %v1160 = vpop.f32.mrf.mxu0
      %v1161 = vadd.f32 %v1000, %v1160
      %v1162 = vpop.f32.mrf.mxu0
      %v1163 = vadd.f32 %v1002, %v1162
      %1164 = vmatprep.mubr.f32.mxu0 %v381
      %1165 = vmatmul.mubr.f32.gmra.mxu0 %v380
      %v1166 = vpop.f32.mrf.mxu0
      %v1167 = vadd.f32 %v1006, %v1166
      %v1168 = vpop.f32.mrf.mxu0
      %v1169 = vadd.f32 %v1008, %v1168
      %1170 = vmatprep.mubr.f32.mxu0 %v388
      %1171 = vmatmul.mubr.f32.gmra.mxu0 %v387
      %v1172 = vpop.f32.mrf.mxu0
      %v1173 = vadd.f32 %v1012, %v1172
      %v1174 = vpop.f32.mrf.mxu0
      %v1175 = vadd.f32 %v1014, %v1174
      %1176 = vdwg.mxu0
      %1177 = vmatprep.subr.mxu0 %v709
      %1178 = vmatpush1.msra.mxu0 %v708
      %1179 = vmatprep.subr.mxu0 %v705
      %1180 = vmatpush1.msra.mxu0 %v704
      %1181 = vmatprep.subr.mxu0 %v701
      %1182 = vmatpush1.msra.mxu0 %v700
      %1183 = vmatprep.subr.mxu0 %v697
      %1184 = vmatpush1.msra.mxu0 %v696
      %1185 = vmatprep.subr.mxu0 %v693
      %1186 = vmatpush1.msra.mxu0 %v692
      %1187 = vmatprep.subr.mxu0 %v689
      %1188 = vmatpush1.msra.mxu0 %v688
      %1189 = vmatprep.subr.mxu0 %v685
      %1190 = vmatpush1.msra.mxu0 %v684
      %1191 = vmatprep.subr.mxu0 %v681
      %1192 = vmatpush1.msra.mxu0 %v680
      %1193 = vmatprep.subr.mxu0 %v677
      %1194 = vmatpush1.msra.mxu0 %v676
      %1195 = vmatprep.subr.mxu0 %v673
      %1196 = vmatpush1.msra.mxu0 %v672
      %1197 = vmatprep.subr.mxu0 %v669
      %1198 = vmatpush1.msra.mxu0 %v668
      %1199 = vmatprep.subr.mxu0 %v665
      %1200 = vmatpush1.msra.mxu0 %v664
      %1201 = vmatprep.subr.mxu0 %v661
      %1202 = vmatpush1.msra.mxu0 %v660
      %1203 = vmatprep.subr.mxu0 %v657
      %1204 = vmatpush1.msra.mxu0 %v656
      %1205 = vmatprep.subr.mxu0 %v653
      %1206 = vmatpush1.msra.mxu0 %v652
      %1207 = vmatprep.subr.mxu0 %v649
      %1208 = vmatpush1.msra.mxu0 %v648
      %1209 = vmatprep.subr.mxu0 %v773
      %1210 = vmatpush2.msra.mxu0 %v772
      %1211 = vmatprep.subr.mxu0 %v769
      %1212 = vmatpush2.msra.mxu0 %v768
      %1213 = vmatprep.subr.mxu0 %v765
      %1214 = vmatpush2.msra.mxu0 %v764
      %1215 = vmatprep.subr.mxu0 %v761
      %1216 = vmatpush2.msra.mxu0 %v760
      %1217 = vmatprep.subr.mxu0 %v757
      %1218 = vmatpush2.msra.mxu0 %v756
      %1219 = vmatprep.subr.mxu0 %v753
      %1220 = vmatpush2.msra.mxu0 %v752
      %1221 = vmatprep.subr.mxu0 %v749
      %1222 = vmatpush2.msra.mxu0 %v748
      %1223 = vmatprep.subr.mxu0 %v745
      %1224 = vmatpush2.msra.mxu0 %v744
      %1225 = vmatprep.subr.mxu0 %v741
      %1226 = vmatpush2.msra.mxu0 %v740
      %1227 = vmatprep.subr.mxu0 %v737
      %1228 = vmatpush2.msra.mxu0 %v736
      %1229 = vmatprep.subr.mxu0 %v733
      %1230 = vmatpush2.msra.mxu0 %v732
      %1231 = vmatprep.subr.mxu0 %v729
      %1232 = vmatpush2.msra.mxu0 %v728
      %1233 = vmatprep.subr.mxu0 %v725
      %1234 = vmatpush2.msra.mxu0 %v724
      %1235 = vmatprep.subr.mxu0 %v721
      %1236 = vmatpush2.msra.mxu0 %v720
      %1237 = vmatprep.subr.mxu0 %v717
      %1238 = vmatpush2.msra.mxu0 %v716
      %1239 = vmatprep.subr.mxu0 %v713
      %1240 = vmatpush2.msra.mxu0 %v712
      %1241 = vmatprep.mubr.f32.mxu0 %v285
      %1242 = vmatmul.mubr.f32.gmra.mxu0 %v284
      %v1243 = vpop.f32.mrf.mxu0
      %v1244 = vadd.f32 %v1083, %v1243
      %v1245 = vpop.f32.mrf.mxu0
      %v1246 = vadd.f32 %v1085, %v1245
      %1247 = vmatprep.mubr.f32.mxu0 %v292
      %1248 = vmatmul.mubr.f32.gmra.mxu0 %v291
      %v1249 = vpop.f32.mrf.mxu0
      %v1250 = vadd.f32 %v1089, %v1249
      %v1251 = vpop.f32.mrf.mxu0
      %v1252 = vadd.f32 %v1091, %v1251
      %1253 = vmatprep.mubr.f32.mxu0 %v299
      %1254 = vmatmul.mubr.f32.gmra.mxu0 %v298
      %v1255 = vpop.f32.mrf.mxu0
      %v1256 = vadd.f32 %v1095, %v1255
      %v1257 = vpop.f32.mrf.mxu0
      %v1258 = vadd.f32 %v1097, %v1257
      %1259 = vmatprep.mubr.f32.mxu0 %v306
      %1260 = vmatmul.mubr.f32.gmra.mxu0 %v305
      %v1261 = vpop.f32.mrf.mxu0
      %v1262 = vadd.f32 %v1101, %v1261
      %v1263 = vpop.f32.mrf.mxu0
      %v1264 = vadd.f32 %v1103, %v1263
      %1265 = vmatprep.mubr.f32.mxu0 %v313
      %1266 = vmatmul.mubr.f32.gmra.mxu0 %v312
      %v1267 = vpop.f32.mrf.mxu0
      %v1268 = vadd.f32 %v1107, %v1267
      %v1269 = vpop.f32.mrf.mxu0
      %v1270 = vadd.f32 %v1109, %v1269
      %1271 = vmatprep.mubr.f32.mxu0 %v320
      %1272 = vmatmul.mubr.f32.gmra.mxu0 %v319
      %v1273 = vpop.f32.mrf.mxu0
      %v1274 = vadd.f32 %v1113, %v1273
      %v1275 = vpop.f32.mrf.mxu0
      %v1276 = vadd.f32 %v1115, %v1275
      %1277 = vmatprep.mubr.f32.mxu0 %v327
      %1278 = vmatmul.mubr.f32.gmra.mxu0 %v326
      %v1279 = vpop.f32.mrf.mxu0
      %v1280 = vadd.f32 %v1119, %v1279
      %v1281 = vpop.f32.mrf.mxu0
      %v1282 = vadd.f32 %v1121, %v1281
      %1283 = vmatprep.mubr.f32.mxu0 %v334
      %1284 = vmatmul.mubr.f32.gmra.mxu0 %v333
      %v1285 = vpop.f32.mrf.mxu0
      %v1286 = vadd.f32 %v1125, %v1285
      %v1287 = vpop.f32.mrf.mxu0
      %v1288 = vadd.f32 %v1127, %v1287
      %1289 = vmatprep.mubr.f32.mxu0 %v341
      %1290 = vmatmul.mubr.f32.gmra.mxu0 %v340
      %v1291 = vpop.f32.mrf.mxu0
      %v1292 = vadd.f32 %v1131, %v1291
      %v1293 = vpop.f32.mrf.mxu0
      %v1294 = vadd.f32 %v1133, %v1293
      %1295 = vmatprep.mubr.f32.mxu0 %v348
      %1296 = vmatmul.mubr.f32.gmra.mxu0 %v347
      %v1297 = vpop.f32.mrf.mxu0
      %v1298 = vadd.f32 %v1137, %v1297
      %v1299 = vpop.f32.mrf.mxu0
      %v1300 = vadd.f32 %v1139, %v1299
      %1301 = vmatprep.mubr.f32.mxu0 %v355
      %1302 = vmatmul.mubr.f32.gmra.mxu0 %v354
      %v1303 = vpop.f32.mrf.mxu0
      %v1304 = vadd.f32 %v1143, %v1303
      %v1305 = vpop.f32.mrf.mxu0
      %v1306 = vadd.f32 %v1145, %v1305
      %1307 = vmatprep.mubr.f32.mxu0 %v362
      %1308 = vmatmul.mubr.f32.gmra.mxu0 %v361
      %v1309 = vpop.f32.mrf.mxu0
      %v1310 = vadd.f32 %v1149, %v1309
      %v1311 = vpop.f32.mrf.mxu0
      %v1312 = vadd.f32 %v1151, %v1311
      %1313 = vmatprep.mubr.f32.mxu0 %v369
      %1314 = vmatmul.mubr.f32.gmra.mxu0 %v368
      %v1315 = vpop.f32.mrf.mxu0
      %v1316 = vadd.f32 %v1155, %v1315
      %v1317 = vpop.f32.mrf.mxu0
      %v1318 = vadd.f32 %v1157, %v1317
      %1319 = vmatprep.mubr.f32.mxu0 %v376
      %1320 = vmatmul.mubr.f32.gmra.mxu0 %v375
      %v1321 = vpop.f32.mrf.mxu0
      %v1322 = vadd.f32 %v1161, %v1321
      %v1323 = vpop.f32.mrf.mxu0
      %v1324 = vadd.f32 %v1163, %v1323
      %1325 = vmatprep.mubr.f32.mxu0 %v383
      %1326 = vmatmul.mubr.f32.gmra.mxu0 %v382
      %v1327 = vpop.f32.mrf.mxu0
      %v1328 = vadd.f32 %v1167, %v1327
      %v1329 = vpop.f32.mrf.mxu0
      %v1330 = vadd.f32 %v1169, %v1329
      %1331 = vmatprep.mubr.f32.mxu0 %v390
      %1332 = vmatmul.mubr.f32.gmra.mxu0 %v389
      %v1333 = vpop.f32.mrf.mxu0
      %v1334 = vadd.f32 %v1173, %v1333
      %v1335 = vpop.f32.mrf.mxu0
      %v1336 = vadd.f32 %v1175, %v1335
      %1337 = vdwg.mxu0
      %1338 = vmatprep.subr.mxu0 0.0
      %1339 = vmatpush1.msra.mxu0 0.0
      %1340 = vmatprep.subr.mxu0 0.0
      %1341 = vmatpush1.msra.mxu0 0.0
      %1342 = vmatprep.subr.mxu0 0.0
      %1343 = vmatpush1.msra.mxu0 0.0
      %1344 = vmatprep.subr.mxu0 0.0
      %1345 = vmatpush1.msra.mxu0 0.0
      %1346 = vmatprep.subr.mxu0 0.0
      %1347 = vmatpush1.msra.mxu0 0.0
      %1348 = vmatprep.subr.mxu0 0.0
      %1349 = vmatpush1.msra.mxu0 0.0
      %1350 = vmatprep.subr.mxu0 0.0
      %1351 = vmatpush1.msra.mxu0 0.0
      %1352 = vmatprep.subr.mxu0 0.0
      %1353 = vmatpush1.msra.mxu0 0.0
      %1354 = vmatprep.subr.mxu0 0.0
      %1355 = vmatpush1.msra.mxu0 0.0
      %1356 = vmatprep.subr.mxu0 0.0
      %1357 = vmatpush1.msra.mxu0 0.0
      %1358 = vmatprep.subr.mxu0 0.0
      %1359 = vmatpush1.msra.mxu0 0.0
      %1360 = vmatprep.subr.mxu0 0.0
      %1361 = vmatpush1.msra.mxu0 0.0
      %1362 = vmatprep.subr.mxu0 0.0
      %1363 = vmatpush1.msra.mxu0 0.0
      %1364 = vmatprep.subr.mxu0 0.0
      %1365 = vmatpush1.msra.mxu0 0.0
      %1366 = vmatprep.subr.mxu0 %v781
      %1367 = vmatpush1.msra.mxu0 %v780
      %1368 = vmatprep.subr.mxu0 %v777
      %1369 = vmatpush1.msra.mxu0 %v776
      %1370 = vmatprep.subr.mxu0 0.0
      %1371 = vmatpush2.msra.mxu0 0.0
      %1372 = vmatprep.subr.mxu0 0.0
      %1373 = vmatpush2.msra.mxu0 0.0
      %1374 = vmatprep.subr.mxu0 0.0
      %1375 = vmatpush2.msra.mxu0 0.0
      %1376 = vmatprep.subr.mxu0 0.0
      %1377 = vmatpush2.msra.mxu0 0.0
      %1378 = vmatprep.subr.mxu0 0.0
      %1379 = vmatpush2.msra.mxu0 0.0
      %1380 = vmatprep.subr.mxu0 0.0
      %1381 = vmatpush2.msra.mxu0 0.0
      %1382 = vmatprep.subr.mxu0 0.0
      %1383 = vmatpush2.msra.mxu0 0.0
      %1384 = vmatprep.subr.mxu0 0.0
      %1385 = vmatpush2.msra.mxu0 0.0
      %1386 = vmatprep.subr.mxu0 0.0
      %1387 = vmatpush2.msra.mxu0 0.0
      %1388 = vmatprep.subr.mxu0 0.0
      %1389 = vmatpush2.msra.mxu0 0.0
      %1390 = vmatprep.subr.mxu0 0.0
      %1391 = vmatpush2.msra.mxu0 0.0
      %1392 = vmatprep.subr.mxu0 0.0
      %1393 = vmatpush2.msra.mxu0 0.0
      %1394 = vmatprep.subr.mxu0 0.0
      %1395 = vmatpush2.msra.mxu0 0.0
      %1396 = vmatprep.subr.mxu0 0.0
      %1397 = vmatpush2.msra.mxu0 0.0
      %1398 = vmatprep.subr.mxu0 0.0
      %1399 = vmatpush2.msra.mxu0 0.0
      %1400 = vmatprep.subr.mxu0 0.0
      %1401 = vmatpush2.msra.mxu0 0.0
      %1402 = vmatprep.mubr.f32.mxu0 0.0
      %1403 = vmatmul.mubr.f32.gmra.mxu0 %v808
      %v1404 = vpop.f32.mrf.mxu0
      %v1405 = vadd.f32 %v1244, %v1404
      %v1406 = vpop.f32.mrf.mxu0
      %v1407 = vadd.f32 %v1246, %v1406
      %1408 = vmatprep.mubr.f32.mxu0 0.0
      %1409 = vmatmul.mubr.f32.gmra.mxu0 %v811
      %v1410 = vpop.f32.mrf.mxu0
      %v1411 = vadd.f32 %v1250, %v1410
      %v1412 = vpop.f32.mrf.mxu0
      %v1413 = vadd.f32 %v1252, %v1412
      %1414 = vmatprep.mubr.f32.mxu0 0.0
      %1415 = vmatmul.mubr.f32.gmra.mxu0 %v814
      %v1416 = vpop.f32.mrf.mxu0
      %v1417 = vadd.f32 %v1256, %v1416
      %v1418 = vpop.f32.mrf.mxu0
      %v1419 = vadd.f32 %v1258, %v1418
      %1420 = vmatprep.mubr.f32.mxu0 0.0
      %1421 = vmatmul.mubr.f32.gmra.mxu0 %v817
      %v1422 = vpop.f32.mrf.mxu0
      %v1423 = vadd.f32 %v1262, %v1422
      %v1424 = vpop.f32.mrf.mxu0
      %v1425 = vadd.f32 %v1264, %v1424
      %1426 = vmatprep.mubr.f32.mxu0 0.0
      %1427 = vmatmul.mubr.f32.gmra.mxu0 %v820
      %v1428 = vpop.f32.mrf.mxu0
      %v1429 = vadd.f32 %v1268, %v1428
      %v1430 = vpop.f32.mrf.mxu0
      %v1431 = vadd.f32 %v1270, %v1430
      %1432 = vmatprep.mubr.f32.mxu0 0.0
      %1433 = vmatmul.mubr.f32.gmra.mxu0 %v823
      %v1434 = vpop.f32.mrf.mxu0
      %v1435 = vadd.f32 %v1274, %v1434
      %v1436 = vpop.f32.mrf.mxu0
      %v1437 = vadd.f32 %v1276, %v1436
      %1438 = vmatprep.mubr.f32.mxu0 0.0
      %1439 = vmatmul.mubr.f32.gmra.mxu0 %v826
      %v1440 = vpop.f32.mrf.mxu0
      %v1441 = vadd.f32 %v1280, %v1440
      %v1442 = vpop.f32.mrf.mxu0
      %v1443 = vadd.f32 %v1282, %v1442
      %1444 = vmatprep.mubr.f32.mxu0 0.0
      %1445 = vmatmul.mubr.f32.gmra.mxu0 %v829
      %v1446 = vpop.f32.mrf.mxu0
      %v1447 = vadd.f32 %v1286, %v1446
      %v1448 = vpop.f32.mrf.mxu0
      %v1449 = vadd.f32 %v1288, %v1448
      %1450 = vmatprep.mubr.f32.mxu0 0.0
      %1451 = vmatmul.mubr.f32.gmra.mxu0 %v832
      %v1452 = vpop.f32.mrf.mxu0
      %v1453 = vadd.f32 %v1292, %v1452
      %v1454 = vpop.f32.mrf.mxu0
      %v1455 = vadd.f32 %v1294, %v1454
      %1456 = vmatprep.mubr.f32.mxu0 0.0
      %1457 = vmatmul.mubr.f32.gmra.mxu0 %v835
      %v1458 = vpop.f32.mrf.mxu0
      %v1459 = vadd.f32 %v1298, %v1458
      %v1460 = vpop.f32.mrf.mxu0
      %v1461 = vadd.f32 %v1300, %v1460
      %1462 = vmatprep.mubr.f32.mxu0 0.0
      %1463 = vmatmul.mubr.f32.gmra.mxu0 %v838
      %v1464 = vpop.f32.mrf.mxu0
      %v1465 = vadd.f32 %v1304, %v1464
      %v1466 = vpop.f32.mrf.mxu0
      %v1467 = vadd.f32 %v1306, %v1466
      %1468 = vmatprep.mubr.f32.mxu0 0.0
      %1469 = vmatmul.mubr.f32.gmra.mxu0 %v841
      %v1470 = vpop.f32.mrf.mxu0
      %v1471 = vadd.f32 %v1310, %v1470
      %v1472 = vpop.f32.mrf.mxu0
      %v1473 = vadd.f32 %v1312, %v1472
      %1474 = vmatprep.mubr.f32.mxu0 0.0
      %1475 = vmatmul.mubr.f32.gmra.mxu0 %v844
      %v1476 = vpop.f32.mrf.mxu0
      %v1477 = vadd.f32 %v1316, %v1476
      %v1478 = vpop.f32.mrf.mxu0
      %v1479 = vadd.f32 %v1318, %v1478
      %1480 = vmatprep.mubr.f32.mxu0 0.0
      %1481 = vmatmul.mubr.f32.gmra.mxu0 %v847
      %v1482 = vpop.f32.mrf.mxu0
      %v1483 = vadd.f32 %v1322, %v1482
      %v1484 = vpop.f32.mrf.mxu0
      %v1485 = vadd.f32 %v1324, %v1484
      %1486 = vmatprep.mubr.f32.mxu0 0.0
      %1487 = vmatmul.mubr.f32.gmra.mxu0 %v850
      %v1488 = vpop.f32.mrf.mxu0
      %v1489 = vadd.f32 %v1328, %v1488
      %v1490 = vpop.f32.mrf.mxu0
      %v1491 = vadd.f32 %v1330, %v1490
      %1492 = vmatprep.mubr.f32.mxu0 0.0
      %1493 = vmatmul.mubr.f32.gmra.mxu0 %v853
      %v1494 = vpop.f32.mrf.mxu0
      %v1495 = vadd.f32 %v1334, %v1494
      %v1496 = vpop.f32.mrf.mxu0
      %v1497 = vadd.f32 %v1336, %v1496
      %1498 = vdwg.mxu0
      %1499 = vmatprep.subr.mxu0 %v455
      %1500 = vmatpush1.msra.mxu0 %v454
      %1501 = vmatprep.subr.mxu0 %v451
      %1502 = vmatpush1.msra.mxu0 %v450
      %1503 = vmatprep.subr.mxu0 %v447
      %1504 = vmatpush1.msra.mxu0 %v446
      %1505 = vmatprep.subr.mxu0 %v443
      %1506 = vmatpush1.msra.mxu0 %v442
      %1507 = vmatprep.subr.mxu0 %v439
      %1508 = vmatpush1.msra.mxu0 %v438
      %1509 = vmatprep.subr.mxu0 %v435
      %1510 = vmatpush1.msra.mxu0 %v434
      %1511 = vmatprep.subr.mxu0 %v431
      %1512 = vmatpush1.msra.mxu0 %v430
      %1513 = vmatprep.subr.mxu0 %v427
      %1514 = vmatpush1.msra.mxu0 %v426
      %1515 = vmatprep.subr.mxu0 %v423
      %1516 = vmatpush1.msra.mxu0 %v422
      %1517 = vmatprep.subr.mxu0 %v419
      %1518 = vmatpush1.msra.mxu0 %v418
      %1519 = vmatprep.subr.mxu0 %v415
      %1520 = vmatpush1.msra.mxu0 %v414
      %1521 = vmatprep.subr.mxu0 %v411
      %1522 = vmatpush1.msra.mxu0 %v410
      %1523 = vmatprep.subr.mxu0 %v407
      %1524 = vmatpush1.msra.mxu0 %v406
      %1525 = vmatprep.subr.mxu0 %v403
      %1526 = vmatpush1.msra.mxu0 %v402
      %1527 = vmatprep.subr.mxu0 %v399
      %1528 = vmatpush1.msra.mxu0 %v398
      %1529 = vmatprep.subr.mxu0 %v395
      %1530 = vmatpush1.msra.mxu0 %v394
      %1531 = vmatprep.subr.mxu0 %v519
      %1532 = vmatpush2.msra.mxu0 %v518
      %1533 = vmatprep.subr.mxu0 %v515
      %1534 = vmatpush2.msra.mxu0 %v514
      %1535 = vmatprep.subr.mxu0 %v511
      %1536 = vmatpush2.msra.mxu0 %v510
      %1537 = vmatprep.subr.mxu0 %v507
      %1538 = vmatpush2.msra.mxu0 %v506
      %1539 = vmatprep.subr.mxu0 %v503
      %1540 = vmatpush2.msra.mxu0 %v502
      %1541 = vmatprep.subr.mxu0 %v499
      %1542 = vmatpush2.msra.mxu0 %v498
      %1543 = vmatprep.subr.mxu0 %v495
      %1544 = vmatpush2.msra.mxu0 %v494
      %1545 = vmatprep.subr.mxu0 %v491
      %1546 = vmatpush2.msra.mxu0 %v490
      %1547 = vmatprep.subr.mxu0 %v487
      %1548 = vmatpush2.msra.mxu0 %v486
      %1549 = vmatprep.subr.mxu0 %v483
      %1550 = vmatpush2.msra.mxu0 %v482
      %1551 = vmatprep.subr.mxu0 %v479
      %1552 = vmatpush2.msra.mxu0 %v478
      %1553 = vmatprep.subr.mxu0 %v475
      %1554 = vmatpush2.msra.mxu0 %v474
      %1555 = vmatprep.subr.mxu0 %v471
      %1556 = vmatpush2.msra.mxu0 %v470
      %1557 = vmatprep.subr.mxu0 %v467
      %1558 = vmatpush2.msra.mxu0 %v466
      %1559 = vmatprep.subr.mxu0 %v463
      %1560 = vmatpush2.msra.mxu0 %v462
      %1561 = vmatprep.subr.mxu0 %v459
      %1562 = vmatpush2.msra.mxu0 %v458
      %1563 = vmatprep.mubr.f32.mxu0 %v281
      %1564 = vmatmul.mubr.f32.gmra.mxu0 %v280
      %v1565 = vpop.f32.mrf.mxu0
      %v1566 = vadd.f32 %v797, %v1565
      %v1567 = vpop.f32.mrf.mxu0
      %v1568 = vadd.f32 %v801, %v1567
      %1569 = vmatprep.mubr.f32.mxu0 %v288
      %1570 = vmatmul.mubr.f32.gmra.mxu0 %v287
      %v1571 = vpop.f32.mrf.mxu0
      %v1572 = vadd.f32 %v797, %v1571
      %v1573 = vpop.f32.mrf.mxu0
      %v1574 = vadd.f32 %v801, %v1573
      %1575 = vmatprep.mubr.f32.mxu0 %v295
      %1576 = vmatmul.mubr.f32.gmra.mxu0 %v294
      %v1577 = vpop.f32.mrf.mxu0
      %v1578 = vadd.f32 %v797, %v1577
      %v1579 = vpop.f32.mrf.mxu0
      %v1580 = vadd.f32 %v801, %v1579
      %1581 = vmatprep.mubr.f32.mxu0 %v302
      %1582 = vmatmul.mubr.f32.gmra.mxu0 %v301
      %v1583 = vpop.f32.mrf.mxu0
      %v1584 = vadd.f32 %v797, %v1583
      %v1585 = vpop.f32.mrf.mxu0
      %v1586 = vadd.f32 %v801, %v1585
      %1587 = vmatprep.mubr.f32.mxu0 %v309
      %1588 = vmatmul.mubr.f32.gmra.mxu0 %v308
      %v1589 = vpop.f32.mrf.mxu0
      %v1590 = vadd.f32 %v797, %v1589
      %v1591 = vpop.f32.mrf.mxu0
      %v1592 = vadd.f32 %v801, %v1591
      %1593 = vmatprep.mubr.f32.mxu0 %v316
      %1594 = vmatmul.mubr.f32.gmra.mxu0 %v315
      %v1595 = vpop.f32.mrf.mxu0
      %v1596 = vadd.f32 %v797, %v1595
      %v1597 = vpop.f32.mrf.mxu0
      %v1598 = vadd.f32 %v801, %v1597
      %1599 = vmatprep.mubr.f32.mxu0 %v323
      %1600 = vmatmul.mubr.f32.gmra.mxu0 %v322
      %v1601 = vpop.f32.mrf.mxu0
      %v1602 = vadd.f32 %v797, %v1601
      %v1603 = vpop.f32.mrf.mxu0
      %v1604 = vadd.f32 %v801, %v1603
      %1605 = vmatprep.mubr.f32.mxu0 %v330
      %1606 = vmatmul.mubr.f32.gmra.mxu0 %v329
      %v1607 = vpop.f32.mrf.mxu0
      %v1608 = vadd.f32 %v797, %v1607
      %v1609 = vpop.f32.mrf.mxu0
      %v1610 = vadd.f32 %v801, %v1609
      %1611 = vmatprep.mubr.f32.mxu0 %v337
      %1612 = vmatmul.mubr.f32.gmra.mxu0 %v336
      %v1613 = vpop.f32.mrf.mxu0
      %v1614 = vadd.f32 %v797, %v1613
      %v1615 = vpop.f32.mrf.mxu0
      %v1616 = vadd.f32 %v801, %v1615
      %1617 = vmatprep.mubr.f32.mxu0 %v344
      %1618 = vmatmul.mubr.f32.gmra.mxu0 %v343
      %v1619 = vpop.f32.mrf.mxu0
      %v1620 = vadd.f32 %v797, %v1619
      %v1621 = vpop.f32.mrf.mxu0
      %v1622 = vadd.f32 %v801, %v1621
      %1623 = vmatprep.mubr.f32.mxu0 %v351
      %1624 = vmatmul.mubr.f32.gmra.mxu0 %v350
      %v1625 = vpop.f32.mrf.mxu0
      %v1626 = vadd.f32 %v797, %v1625
      %v1627 = vpop.f32.mrf.mxu0
      %v1628 = vadd.f32 %v801, %v1627
      %1629 = vmatprep.mubr.f32.mxu0 %v358
      %1630 = vmatmul.mubr.f32.gmra.mxu0 %v357
      %v1631 = vpop.f32.mrf.mxu0
      %v1632 = vadd.f32 %v797, %v1631
      %v1633 = vpop.f32.mrf.mxu0
      %v1634 = vadd.f32 %v801, %v1633
      %1635 = vmatprep.mubr.f32.mxu0 %v365
      %1636 = vmatmul.mubr.f32.gmra.mxu0 %v364
      %v1637 = vpop.f32.mrf.mxu0
      %v1638 = vadd.f32 %v797, %v1637
      %v1639 = vpop.f32.mrf.mxu0
      %v1640 = vadd.f32 %v801, %v1639
      %1641 = vmatprep.mubr.f32.mxu0 %v372
      %1642 = vmatmul.mubr.f32.gmra.mxu0 %v371
      %v1643 = vpop.f32.mrf.mxu0
      %v1644 = vadd.f32 %v797, %v1643
      %v1645 = vpop.f32.mrf.mxu0
      %v1646 = vadd.f32 %v801, %v1645
      %1647 = vmatprep.mubr.f32.mxu0 %v379
      %1648 = vmatmul.mubr.f32.gmra.mxu0 %v378
      %v1649 = vpop.f32.mrf.mxu0
      %v1650 = vadd.f32 %v797, %v1649
      %v1651 = vpop.f32.mrf.mxu0
      %v1652 = vadd.f32 %v801, %v1651
      %1653 = vmatprep.mubr.f32.mxu0 %v386
      %1654 = vmatmul.mubr.f32.gmra.mxu0 %v385
      %v1655 = vpop.f32.mrf.mxu0
      %v1656 = vadd.f32 %v797, %v1655
      %v1657 = vpop.f32.mrf.mxu0
      %v1658 = vadd.f32 %v801, %v1657
      %1659 = vdwg.mxu0
      %1660 = vmatprep.subr.mxu0 %v583
      %1661 = vmatpush1.msra.mxu0 %v582
      %1662 = vmatprep.subr.mxu0 %v579
      %1663 = vmatpush1.msra.mxu0 %v578
      %1664 = vmatprep.subr.mxu0 %v575
      %1665 = vmatpush1.msra.mxu0 %v574
      %1666 = vmatprep.subr.mxu0 %v571
      %1667 = vmatpush1.msra.mxu0 %v570
      %1668 = vmatprep.subr.mxu0 %v567
      %1669 = vmatpush1.msra.mxu0 %v566
      %1670 = vmatprep.subr.mxu0 %v563
      %1671 = vmatpush1.msra.mxu0 %v562
      %1672 = vmatprep.subr.mxu0 %v559
      %1673 = vmatpush1.msra.mxu0 %v558
      %1674 = vmatprep.subr.mxu0 %v555
      %1675 = vmatpush1.msra.mxu0 %v554
      %1676 = vmatprep.subr.mxu0 %v551
      %1677 = vmatpush1.msra.mxu0 %v550
      %1678 = vmatprep.subr.mxu0 %v547
      %1679 = vmatpush1.msra.mxu0 %v546
      %1680 = vmatprep.subr.mxu0 %v543
      %1681 = vmatpush1.msra.mxu0 %v542
      %1682 = vmatprep.subr.mxu0 %v539
      %1683 = vmatpush1.msra.mxu0 %v538
      %1684 = vmatprep.subr.mxu0 %v535
      %1685 = vmatpush1.msra.mxu0 %v534
      %1686 = vmatprep.subr.mxu0 %v531
      %1687 = vmatpush1.msra.mxu0 %v530
      %1688 = vmatprep.subr.mxu0 %v527
      %1689 = vmatpush1.msra.mxu0 %v526
      %1690 = vmatprep.subr.mxu0 %v523
      %1691 = vmatpush1.msra.mxu0 %v522
      %1692 = vmatprep.subr.mxu0 %v647
      %1693 = vmatpush2.msra.mxu0 %v646
      %1694 = vmatprep.subr.mxu0 %v643
      %1695 = vmatpush2.msra.mxu0 %v642
      %1696 = vmatprep.subr.mxu0 %v639
      %1697 = vmatpush2.msra.mxu0 %v638
      %1698 = vmatprep.subr.mxu0 %v635
      %1699 = vmatpush2.msra.mxu0 %v634
      %1700 = vmatprep.subr.mxu0 %v631
      %1701 = vmatpush2.msra.mxu0 %v630
      %1702 = vmatprep.subr.mxu0 %v627
      %1703 = vmatpush2.msra.mxu0 %v626
      %1704 = vmatprep.subr.mxu0 %v623
      %1705 = vmatpush2.msra.mxu0 %v622
      %1706 = vmatprep.subr.mxu0 %v619
      %1707 = vmatpush2.msra.mxu0 %v618
      %1708 = vmatprep.subr.mxu0 %v615
      %1709 = vmatpush2.msra.mxu0 %v614
      %1710 = vmatprep.subr.mxu0 %v611
      %1711 = vmatpush2.msra.mxu0 %v610
      %1712 = vmatprep.subr.mxu0 %v607
      %1713 = vmatpush2.msra.mxu0 %v606
      %1714 = vmatprep.subr.mxu0 %v603
      %1715 = vmatpush2.msra.mxu0 %v602
      %1716 = vmatprep.subr.mxu0 %v599
      %1717 = vmatpush2.msra.mxu0 %v598
      %1718 = vmatprep.subr.mxu0 %v595
      %1719 = vmatpush2.msra.mxu0 %v594
      %1720 = vmatprep.subr.mxu0 %v591
      %1721 = vmatpush2.msra.mxu0 %v590
      %1722 = vmatprep.subr.mxu0 %v587
      %1723 = vmatpush2.msra.mxu0 %v586
      %1724 = vmatprep.mubr.f32.mxu0 %v283
      %1725 = vmatmul.mubr.f32.gmra.mxu0 %v282
      %v1726 = vpop.f32.mrf.mxu0
      %v1727 = vadd.f32 %v1566, %v1726
      %v1728 = vpop.f32.mrf.mxu0
      %v1729 = vadd.f32 %v1568, %v1728
      %1730 = vmatprep.mubr.f32.mxu0 %v290
      %1731 = vmatmul.mubr.f32.gmra.mxu0 %v289
      %v1732 = vpop.f32.mrf.mxu0
      %v1733 = vadd.f32 %v1572, %v1732
      %v1734 = vpop.f32.mrf.mxu0
      %v1735 = vadd.f32 %v1574, %v1734
      %1736 = vmatprep.mubr.f32.mxu0 %v297
      %1737 = vmatmul.mubr.f32.gmra.mxu0 %v296
      %v1738 = vpop.f32.mrf.mxu0
      %v1739 = vadd.f32 %v1578, %v1738
      %v1740 = vpop.f32.mrf.mxu0
      %v1741 = vadd.f32 %v1580, %v1740
      %1742 = vmatprep.mubr.f32.mxu0 %v304
      %1743 = vmatmul.mubr.f32.gmra.mxu0 %v303
      %v1744 = vpop.f32.mrf.mxu0
      %v1745 = vadd.f32 %v1584, %v1744
      %v1746 = vpop.f32.mrf.mxu0
      %v1747 = vadd.f32 %v1586, %v1746
      %1748 = vmatprep.mubr.f32.mxu0 %v311
      %1749 = vmatmul.mubr.f32.gmra.mxu0 %v310
      %v1750 = vpop.f32.mrf.mxu0
      %v1751 = vadd.f32 %v1590, %v1750
      %v1752 = vpop.f32.mrf.mxu0
      %v1753 = vadd.f32 %v1592, %v1752
      %1754 = vmatprep.mubr.f32.mxu0 %v318
      %1755 = vmatmul.mubr.f32.gmra.mxu0 %v317
      %v1756 = vpop.f32.mrf.mxu0
      %v1757 = vadd.f32 %v1596, %v1756
      %v1758 = vpop.f32.mrf.mxu0
      %v1759 = vadd.f32 %v1598, %v1758
      %1760 = vmatprep.mubr.f32.mxu0 %v325
      %1761 = vmatmul.mubr.f32.gmra.mxu0 %v324
      %v1762 = vpop.f32.mrf.mxu0
      %v1763 = vadd.f32 %v1602, %v1762
      %v1764 = vpop.f32.mrf.mxu0
      %v1765 = vadd.f32 %v1604, %v1764
      %1766 = vmatprep.mubr.f32.mxu0 %v332
      %1767 = vmatmul.mubr.f32.gmra.mxu0 %v331
      %v1768 = vpop.f32.mrf.mxu0
      %v1769 = vadd.f32 %v1608, %v1768
      %v1770 = vpop.f32.mrf.mxu0
      %v1771 = vadd.f32 %v1610, %v1770
      %1772 = vmatprep.mubr.f32.mxu0 %v339
      %1773 = vmatmul.mubr.f32.gmra.mxu0 %v338
      %v1774 = vpop.f32.mrf.mxu0
      %v1775 = vadd.f32 %v1614, %v1774
      %v1776 = vpop.f32.mrf.mxu0
      %v1777 = vadd.f32 %v1616, %v1776
      %1778 = vmatprep.mubr.f32.mxu0 %v346
      %1779 = vmatmul.mubr.f32.gmra.mxu0 %v345
      %v1780 = vpop.f32.mrf.mxu0
      %v1781 = vadd.f32 %v1620, %v1780
      %v1782 = vpop.f32.mrf.mxu0
      %v1783 = vadd.f32 %v1622, %v1782
      %1784 = vmatprep.mubr.f32.mxu0 %v353
      %1785 = vmatmul.mubr.f32.gmra.mxu0 %v352
      %v1786 = vpop.f32.mrf.mxu0
      %v1787 = vadd.f32 %v1626, %v1786
      %v1788 = vpop.f32.mrf.mxu0
      %v1789 = vadd.f32 %v1628, %v1788
      %1790 = vmatprep.mubr.f32.mxu0 %v360
      %1791 = vmatmul.mubr.f32.gmra.mxu0 %v359
      %v1792 = vpop.f32.mrf.mxu0
      %v1793 = vadd.f32 %v1632, %v1792
      %v1794 = vpop.f32.mrf.mxu0
      %v1795 = vadd.f32 %v1634, %v1794
      %1796 = vmatprep.mubr.f32.mxu0 %v367
      %1797 = vmatmul.mubr.f32.gmra.mxu0 %v366
      %v1798 = vpop.f32.mrf.mxu0
      %v1799 = vadd.f32 %v1638, %v1798
      %v1800 = vpop.f32.mrf.mxu0
      %v1801 = vadd.f32 %v1640, %v1800
      %1802 = vmatprep.mubr.f32.mxu0 %v374
      %1803 = vmatmul.mubr.f32.gmra.mxu0 %v373
      %v1804 = vpop.f32.mrf.mxu0
      %v1805 = vadd.f32 %v1644, %v1804
      %v1806 = vpop.f32.mrf.mxu0
      %v1807 = vadd.f32 %v1646, %v1806
      %1808 = vmatprep.mubr.f32.mxu0 %v381
      %1809 = vmatmul.mubr.f32.gmra.mxu0 %v380
      %v1810 = vpop.f32.mrf.mxu0
      %v1811 = vadd.f32 %v1650, %v1810
      %v1812 = vpop.f32.mrf.mxu0
      %v1813 = vadd.f32 %v1652, %v1812
      %1814 = vmatprep.mubr.f32.mxu0 %v388
      %1815 = vmatmul.mubr.f32.gmra.mxu0 %v387
      %v1816 = vpop.f32.mrf.mxu0
      %v1817 = vadd.f32 %v1656, %v1816
      %v1818 = vpop.f32.mrf.mxu0
      %v1819 = vadd.f32 %v1658, %v1818
      %1820 = vdwg.mxu0
      %1821 = vmatprep.subr.mxu0 %v711
      %1822 = vmatpush1.msra.mxu0 %v710
      %1823 = vmatprep.subr.mxu0 %v707
      %1824 = vmatpush1.msra.mxu0 %v706
      %1825 = vmatprep.subr.mxu0 %v703
      %1826 = vmatpush1.msra.mxu0 %v702
      %1827 = vmatprep.subr.mxu0 %v699
      %1828 = vmatpush1.msra.mxu0 %v698
      %1829 = vmatprep.subr.mxu0 %v695
      %1830 = vmatpush1.msra.mxu0 %v694
      %1831 = vmatprep.subr.mxu0 %v691
      %1832 = vmatpush1.msra.mxu0 %v690
      %1833 = vmatprep.subr.mxu0 %v687
      %1834 = vmatpush1.msra.mxu0 %v686
      %1835 = vmatprep.subr.mxu0 %v683
      %1836 = vmatpush1.msra.mxu0 %v682
      %1837 = vmatprep.subr.mxu0 %v679
      %1838 = vmatpush1.msra.mxu0 %v678
      %1839 = vmatprep.subr.mxu0 %v675
      %1840 = vmatpush1.msra.mxu0 %v674
      %1841 = vmatprep.subr.mxu0 %v671
      %1842 = vmatpush1.msra.mxu0 %v670
      %1843 = vmatprep.subr.mxu0 %v667
      %1844 = vmatpush1.msra.mxu0 %v666
      %1845 = vmatprep.subr.mxu0 %v663
      %1846 = vmatpush1.msra.mxu0 %v662
      %1847 = vmatprep.subr.mxu0 %v659
      %1848 = vmatpush1.msra.mxu0 %v658
      %1849 = vmatprep.subr.mxu0 %v655
      %1850 = vmatpush1.msra.mxu0 %v654
      %1851 = vmatprep.subr.mxu0 %v651
      %1852 = vmatpush1.msra.mxu0 %v650
      %1853 = vmatprep.subr.mxu0 %v775
      %1854 = vmatpush2.msra.mxu0 %v774
      %1855 = vmatprep.subr.mxu0 %v771
      %1856 = vmatpush2.msra.mxu0 %v770
      %1857 = vmatprep.subr.mxu0 %v767
      %1858 = vmatpush2.msra.mxu0 %v766
      %1859 = vmatprep.subr.mxu0 %v763
      %1860 = vmatpush2.msra.mxu0 %v762
      %1861 = vmatprep.subr.mxu0 %v759
      %1862 = vmatpush2.msra.mxu0 %v758
      %1863 = vmatprep.subr.mxu0 %v755
      %1864 = vmatpush2.msra.mxu0 %v754
      %1865 = vmatprep.subr.mxu0 %v751
      %1866 = vmatpush2.msra.mxu0 %v750
      %1867 = vmatprep.subr.mxu0 %v747
      %1868 = vmatpush2.msra.mxu0 %v746
      %1869 = vmatprep.subr.mxu0 %v743
      %1870 = vmatpush2.msra.mxu0 %v742
      %1871 = vmatprep.subr.mxu0 %v739
      %1872 = vmatpush2.msra.mxu0 %v738
      %1873 = vmatprep.subr.mxu0 %v735
      %1874 = vmatpush2.msra.mxu0 %v734
      %1875 = vmatprep.subr.mxu0 %v731
      %1876 = vmatpush2.msra.mxu0 %v730
      %1877 = vmatprep.subr.mxu0 %v727
      %1878 = vmatpush2.msra.mxu0 %v726
      %1879 = vmatprep.subr.mxu0 %v723
      %1880 = vmatpush2.msra.mxu0 %v722
      %1881 = vmatprep.subr.mxu0 %v719
      %1882 = vmatpush2.msra.mxu0 %v718
      %1883 = vmatprep.subr.mxu0 %v715
      %1884 = vmatpush2.msra.mxu0 %v714
      %1885 = vmatprep.mubr.f32.mxu0 %v285
      %1886 = vmatmul.mubr.f32.gmra.mxu0 %v284
      %v1887 = vpop.f32.mrf.mxu0
      %v1888 = vadd.f32 %v1727, %v1887
      %v1889 = vpop.f32.mrf.mxu0
      %v1890 = vadd.f32 %v1729, %v1889
      %1891 = vmatprep.mubr.f32.mxu0 %v292
      %1892 = vmatmul.mubr.f32.gmra.mxu0 %v291
      %v1893 = vpop.f32.mrf.mxu0
      %v1894 = vadd.f32 %v1733, %v1893
      %v1895 = vpop.f32.mrf.mxu0
      %v1896 = vadd.f32 %v1735, %v1895
      %1897 = vmatprep.mubr.f32.mxu0 %v299
      %1898 = vmatmul.mubr.f32.gmra.mxu0 %v298
      %v1899 = vpop.f32.mrf.mxu0
      %v1900 = vadd.f32 %v1739, %v1899
      %v1901 = vpop.f32.mrf.mxu0
      %v1902 = vadd.f32 %v1741, %v1901
      %1903 = vmatprep.mubr.f32.mxu0 %v306
      %1904 = vmatmul.mubr.f32.gmra.mxu0 %v305
      %v1905 = vpop.f32.mrf.mxu0
      %v1906 = vadd.f32 %v1745, %v1905
      %v1907 = vpop.f32.mrf.mxu0
      %v1908 = vadd.f32 %v1747, %v1907
      %1909 = vmatprep.mubr.f32.mxu0 %v313
      %1910 = vmatmul.mubr.f32.gmra.mxu0 %v312
      %v1911 = vpop.f32.mrf.mxu0
      %v1912 = vadd.f32 %v1751, %v1911
      %v1913 = vpop.f32.mrf.mxu0
      %v1914 = vadd.f32 %v1753, %v1913
      %1915 = vmatprep.mubr.f32.mxu0 %v320
      %1916 = vmatmul.mubr.f32.gmra.mxu0 %v319
      %v1917 = vpop.f32.mrf.mxu0
      %v1918 = vadd.f32 %v1757, %v1917
      %v1919 = vpop.f32.mrf.mxu0
      %v1920 = vadd.f32 %v1759, %v1919
      %1921 = vmatprep.mubr.f32.mxu0 %v327
      %1922 = vmatmul.mubr.f32.gmra.mxu0 %v326
      %v1923 = vpop.f32.mrf.mxu0
      %v1924 = vadd.f32 %v1763, %v1923
      %v1925 = vpop.f32.mrf.mxu0
      %v1926 = vadd.f32 %v1765, %v1925
      %1927 = vmatprep.mubr.f32.mxu0 %v334
      %1928 = vmatmul.mubr.f32.gmra.mxu0 %v333
      %v1929 = vpop.f32.mrf.mxu0
      %v1930 = vadd.f32 %v1769, %v1929
      %v1931 = vpop.f32.mrf.mxu0
      %v1932 = vadd.f32 %v1771, %v1931
      %1933 = vmatprep.mubr.f32.mxu0 %v341
      %1934 = vmatmul.mubr.f32.gmra.mxu0 %v340
      %v1935 = vpop.f32.mrf.mxu0
      %v1936 = vadd.f32 %v1775, %v1935
      %v1937 = vpop.f32.mrf.mxu0
      %v1938 = vadd.f32 %v1777, %v1937
      %1939 = vmatprep.mubr.f32.mxu0 %v348
      %1940 = vmatmul.mubr.f32.gmra.mxu0 %v347
      %v1941 = vpop.f32.mrf.mxu0
      %v1942 = vadd.f32 %v1781, %v1941
      %v1943 = vpop.f32.mrf.mxu0
      %v1944 = vadd.f32 %v1783, %v1943
      %1945 = vmatprep.mubr.f32.mxu0 %v355
      %1946 = vmatmul.mubr.f32.gmra.mxu0 %v354
      %v1947 = vpop.f32.mrf.mxu0
      %v1948 = vadd.f32 %v1787, %v1947
      %v1949 = vpop.f32.mrf.mxu0
      %v1950 = vadd.f32 %v1789, %v1949
      %1951 = vmatprep.mubr.f32.mxu0 %v362
      %1952 = vmatmul.mubr.f32.gmra.mxu0 %v361
      %v1953 = vpop.f32.mrf.mxu0
      %v1954 = vadd.f32 %v1793, %v1953
      %v1955 = vpop.f32.mrf.mxu0
      %v1956 = vadd.f32 %v1795, %v1955
      %1957 = vmatprep.mubr.f32.mxu0 %v369
      %1958 = vmatmul.mubr.f32.gmra.mxu0 %v368
      %v1959 = vpop.f32.mrf.mxu0
      %v1960 = vadd.f32 %v1799, %v1959
      %v1961 = vpop.f32.mrf.mxu0
      %v1962 = vadd.f32 %v1801, %v1961
      %1963 = vmatprep.mubr.f32.mxu0 %v376
      %1964 = vmatmul.mubr.f32.gmra.mxu0 %v375
      %v1965 = vpop.f32.mrf.mxu0
      %v1966 = vadd.f32 %v1805, %v1965
      %v1967 = vpop.f32.mrf.mxu0
      %v1968 = vadd.f32 %v1807, %v1967
      %1969 = vmatprep.mubr.f32.mxu0 %v383
      %1970 = vmatmul.mubr.f32.gmra.mxu0 %v382
      %v1971 = vpop.f32.mrf.mxu0
      %v1972 = vadd.f32 %v1811, %v1971
      %v1973 = vpop.f32.mrf.mxu0
      %v1974 = vadd.f32 %v1813, %v1973
      %1975 = vmatprep.mubr.f32.mxu0 %v390
      %1976 = vmatmul.mubr.f32.gmra.mxu0 %v389
      %v1977 = vpop.f32.mrf.mxu0
      %v1978 = vadd.f32 %v1817, %v1977
      %v1979 = vpop.f32.mrf.mxu0
      %v1980 = vadd.f32 %v1819, %v1979
      %1981 = vdwg.mxu0
      %1982 = vmatprep.subr.mxu0 0.0
      %1983 = vmatpush1.msra.mxu0 0.0
      %1984 = vmatprep.subr.mxu0 0.0
      %1985 = vmatpush1.msra.mxu0 0.0
      %1986 = vmatprep.subr.mxu0 0.0
      %1987 = vmatpush1.msra.mxu0 0.0
      %1988 = vmatprep.subr.mxu0 0.0
      %1989 = vmatpush1.msra.mxu0 0.0
      %1990 = vmatprep.subr.mxu0 0.0
      %1991 = vmatpush1.msra.mxu0 0.0
      %1992 = vmatprep.subr.mxu0 0.0
      %1993 = vmatpush1.msra.mxu0 0.0
      %1994 = vmatprep.subr.mxu0 0.0
      %1995 = vmatpush1.msra.mxu0 0.0
      %1996 = vmatprep.subr.mxu0 0.0
      %1997 = vmatpush1.msra.mxu0 0.0
      %1998 = vmatprep.subr.mxu0 0.0
      %1999 = vmatpush1.msra.mxu0 0.0
      %2000 = vmatprep.subr.mxu0 0.0
      %2001 = vmatpush1.msra.mxu0 0.0
      %2002 = vmatprep.subr.mxu0 0.0
      %2003 = vmatpush1.msra.mxu0 0.0
      %2004 = vmatprep.subr.mxu0 0.0
      %2005 = vmatpush1.msra.mxu0 0.0
      %2006 = vmatprep.subr.mxu0 0.0
      %2007 = vmatpush1.msra.mxu0 0.0
      %2008 = vmatprep.subr.mxu0 0.0
      %2009 = vmatpush1.msra.mxu0 0.0
      %2010 = vmatprep.subr.mxu0 %v783
      %2011 = vmatpush1.msra.mxu0 %v782
      %2012 = vmatprep.subr.mxu0 %v779
      %2013 = vmatpush1.msra.mxu0 %v778
      %2014 = vmatprep.subr.mxu0 0.0
      %2015 = vmatpush2.msra.mxu0 0.0
      %2016 = vmatprep.subr.mxu0 0.0
      %2017 = vmatpush2.msra.mxu0 0.0
      %2018 = vmatprep.subr.mxu0 0.0
      %2019 = vmatpush2.msra.mxu0 0.0
      %2020 = vmatprep.subr.mxu0 0.0
      %2021 = vmatpush2.msra.mxu0 0.0
      %2022 = vmatprep.subr.mxu0 0.0
      %2023 = vmatpush2.msra.mxu0 0.0
      %2024 = vmatprep.subr.mxu0 0.0
      %2025 = vmatpush2.msra.mxu0 0.0
      %2026 = vmatprep.subr.mxu0 0.0
      %2027 = vmatpush2.msra.mxu0 0.0
      %2028 = vmatprep.subr.mxu0 0.0
      %2029 = vmatpush2.msra.mxu0 0.0
      %2030 = vmatprep.subr.mxu0 0.0
      %2031 = vmatpush2.msra.mxu0 0.0
      %2032 = vmatprep.subr.mxu0 0.0
      %2033 = vmatpush2.msra.mxu0 0.0
      %2034 = vmatprep.subr.mxu0 0.0
      %2035 = vmatpush2.msra.mxu0 0.0
      %2036 = vmatprep.subr.mxu0 0.0
      %2037 = vmatpush2.msra.mxu0 0.0
      %2038 = vmatprep.subr.mxu0 0.0
      %2039 = vmatpush2.msra.mxu0 0.0
      %2040 = vmatprep.subr.mxu0 0.0
      %2041 = vmatpush2.msra.mxu0 0.0
      %2042 = vmatprep.subr.mxu0 0.0
      %2043 = vmatpush2.msra.mxu0 0.0
      %2044 = vmatprep.subr.mxu0 0.0
      %2045 = vmatpush2.msra.mxu0 0.0
      %2046 = vmatprep.mubr.f32.mxu0 0.0
      %2047 = vmatmul.mubr.f32.gmra.mxu0 %v808
      %v2048 = vpop.f32.mrf.mxu0
      %v2049 = vadd.f32 %v1888, %v2048
      %v2050 = vpop.f32.mrf.mxu0
      %v2051 = vadd.f32 %v1890, %v2050
      %2052 = vmatprep.mubr.f32.mxu0 0.0
      %2053 = vmatmul.mubr.f32.gmra.mxu0 %v811
      %v2054 = vpop.f32.mrf.mxu0
      %v2055 = vadd.f32 %v1894, %v2054
      %v2056 = vpop.f32.mrf.mxu0
      %v2057 = vadd.f32 %v1896, %v2056
      %2058 = vmatprep.mubr.f32.mxu0 0.0
      %2059 = vmatmul.mubr.f32.gmra.mxu0 %v814
      %v2060 = vpop.f32.mrf.mxu0
      %v2061 = vadd.f32 %v1900, %v2060
      %v2062 = vpop.f32.mrf.mxu0
      %v2063 = vadd.f32 %v1902, %v2062
      %2064 = vmatprep.mubr.f32.mxu0 0.0
      %2065 = vmatmul.mubr.f32.gmra.mxu0 %v817
      %v2066 = vpop.f32.mrf.mxu0
      %v2067 = vadd.f32 %v1906, %v2066
      %v2068 = vpop.f32.mrf.mxu0
      %v2069 = vadd.f32 %v1908, %v2068
      %2070 = vmatprep.mubr.f32.mxu0 0.0
      %2071 = vmatmul.mubr.f32.gmra.mxu0 %v820
      %v2072 = vpop.f32.mrf.mxu0
      %v2073 = vadd.f32 %v1912, %v2072
      %v2074 = vpop.f32.mrf.mxu0
      %v2075 = vadd.f32 %v1914, %v2074
      %2076 = vmatprep.mubr.f32.mxu0 0.0
      %2077 = vmatmul.mubr.f32.gmra.mxu0 %v823
      %v2078 = vpop.f32.mrf.mxu0
      %v2079 = vadd.f32 %v1918, %v2078
      %v2080 = vpop.f32.mrf.mxu0
      %v2081 = vadd.f32 %v1920, %v2080
      %2082 = vmatprep.mubr.f32.mxu0 0.0
      %2083 = vmatmul.mubr.f32.gmra.mxu0 %v826
      %v2084 = vpop.f32.mrf.mxu0
      %v2085 = vadd.f32 %v1924, %v2084
      %v2086 = vpop.f32.mrf.mxu0
      %v2087 = vadd.f32 %v1926, %v2086
      %2088 = vmatprep.mubr.f32.mxu0 0.0
      %2089 = vmatmul.mubr.f32.gmra.mxu0 %v829
      %v2090 = vpop.f32.mrf.mxu0
      %v2091 = vadd.f32 %v1930, %v2090
      %v2092 = vpop.f32.mrf.mxu0
      %v2093 = vadd.f32 %v1932, %v2092
      %2094 = vmatprep.mubr.f32.mxu0 0.0
      %2095 = vmatmul.mubr.f32.gmra.mxu0 %v832
      %v2096 = vpop.f32.mrf.mxu0
      %v2097 = vadd.f32 %v1936, %v2096
      %v2098 = vpop.f32.mrf.mxu0
      %v2099 = vadd.f32 %v1938, %v2098
      %2100 = vmatprep.mubr.f32.mxu0 0.0
      %2101 = vmatmul.mubr.f32.gmra.mxu0 %v835
      %v2102 = vpop.f32.mrf.mxu0
      %v2103 = vadd.f32 %v1942, %v2102
      %v2104 = vpop.f32.mrf.mxu0
      %v2105 = vadd.f32 %v1944, %v2104
      %2106 = vmatprep.mubr.f32.mxu0 0.0
      %2107 = vmatmul.mubr.f32.gmra.mxu0 %v838
      %v2108 = vpop.f32.mrf.mxu0
      %v2109 = vadd.f32 %v1948, %v2108
      %v2110 = vpop.f32.mrf.mxu0
      %v2111 = vadd.f32 %v1950, %v2110
      %2112 = vmatprep.mubr.f32.mxu0 0.0
      %2113 = vmatmul.mubr.f32.gmra.mxu0 %v841
      %v2114 = vpop.f32.mrf.mxu0
      %v2115 = vadd.f32 %v1954, %v2114
      %v2116 = vpop.f32.mrf.mxu0
      %v2117 = vadd.f32 %v1956, %v2116
      %2118 = vmatprep.mubr.f32.mxu0 0.0
      %2119 = vmatmul.mubr.f32.gmra.mxu0 %v844
      %v2120 = vpop.f32.mrf.mxu0
      %v2121 = vadd.f32 %v1960, %v2120
      %v2122 = vpop.f32.mrf.mxu0
      %v2123 = vadd.f32 %v1962, %v2122
      %2124 = vmatprep.mubr.f32.mxu0 0.0
      %2125 = vmatmul.mubr.f32.gmra.mxu0 %v847
      %v2126 = vpop.f32.mrf.mxu0
      %v2127 = vadd.f32 %v1966, %v2126
      %v2128 = vpop.f32.mrf.mxu0
      %v2129 = vadd.f32 %v1968, %v2128
      %2130 = vmatprep.mubr.f32.mxu0 0.0
      %2131 = vmatmul.mubr.f32.gmra.mxu0 %v850
      %v2132 = vpop.f32.mrf.mxu0
      %v2133 = vadd.f32 %v1972, %v2132
      %v2134 = vpop.f32.mrf.mxu0
      %v2135 = vadd.f32 %v1974, %v2134
      %2136 = vmatprep.mubr.f32.mxu0 0.0
      %2137 = vmatmul.mubr.f32.gmra.mxu0 %v853
      %v2138 = vpop.f32.mrf.mxu0
      %v2139 = vadd.f32 %v1978, %v2138
      %v2140 = vpop.f32.mrf.mxu0
      %v2141 = vadd.f32 %v1980, %v2140
      %2142 = vdwg.mxu0
      %v2143 = vmax.f32 %v1405, 0.0
      %v2144 = vmax.f32 %v1407, 0.0
      %v2145 = vmax.f32 %v2049, 0.0
      %v2146 = vmax.f32 %v2051, 0.0
      %v2147 = vmax.f32 %v1411, 0.0
      %v2148 = vmax.f32 %v1413, 0.0
      %v2149 = vmax.f32 %v2055, 0.0
      %v2150 = vmax.f32 %v2057, 0.0
      %v2151 = vmax.f32 %v1417, 0.0
      %v2152 = vmax.f32 %v1419, 0.0
      %v2153 = vmax.f32 %v2061, 0.0
      %v2154 = vmax.f32 %v2063, 0.0
      %v2155 = vmax.f32 %v1423, 0.0
      %v2156 = vmax.f32 %v1425, 0.0
      %v2157 = vmax.f32 %v2067, 0.0
      %v2158 = vmax.f32 %v2069, 0.0
      %v2159 = vmax.f32 %v1429, 0.0
      %v2160 = vmax.f32 %v1431, 0.0
      %v2161 = vmax.f32 %v2073, 0.0
      %v2162 = vmax.f32 %v2075, 0.0
      %v2163 = vmax.f32 %v1435, 0.0
      %v2164 = vmax.f32 %v1437, 0.0
      %v2165 = vmax.f32 %v2079, 0.0
      %v2166 = vmax.f32 %v2081, 0.0
      %v2167 = vmax.f32 %v1441, 0.0
      %v2168 = vmax.f32 %v1443, 0.0
      %v2169 = vmax.f32 %v2085, 0.0
      %v2170 = vmax.f32 %v2087, 0.0
      %v2171 = vmax.f32 %v1447, 0.0
      %v2172 = vmax.f32 %v1449, 0.0
      %v2173 = vmax.f32 %v2091, 0.0
      %v2174 = vmax.f32 %v2093, 0.0
      %v2175 = vmax.f32 %v1453, 0.0
      %v2176 = vmax.f32 %v1455, 0.0
      %v2177 = vmax.f32 %v2097, 0.0
      %v2178 = vmax.f32 %v2099, 0.0
      %v2179 = vmax.f32 %v1459, 0.0
      %v2180 = vmax.f32 %v1461, 0.0
      %v2181 = vmax.f32 %v2103, 0.0
      %v2182 = vmax.f32 %v2105, 0.0
      %v2183 = vmax.f32 %v1465, 0.0
      %v2184 = vmax.f32 %v1467, 0.0
      %v2185 = vmax.f32 %v2109, 0.0
      %v2186 = vmax.f32 %v2111, 0.0
      %v2187 = vmax.f32 %v1471, 0.0
      %v2188 = vmax.f32 %v1473, 0.0
      %v2189 = vmax.f32 %v2115, 0.0
      %v2190 = vmax.f32 %v2117, 0.0
      %v2191 = vmax.f32 %v1477, 0.0
      %v2192 = vmax.f32 %v1479, 0.0
      %v2193 = vmax.f32 %v2121, 0.0
      %v2194 = vmax.f32 %v2123, 0.0
      %v2195 = vmax.f32 %v1483, 0.0
      %v2196 = vmax.f32 %v1485, 0.0
      %v2197 = vmax.f32 %v2127, 0.0
      %v2198 = vmax.f32 %v2129, 0.0
      %v2199 = vmax.f32 %v1489, 0.0
      %v2200 = vmax.f32 %v1491, 0.0
      %v2201 = vmax.f32 %v2133, 0.0
      %v2202 = vmax.f32 %v2135, 0.0
      %v2203 = vmax.f32 %v1495, 0.0
      %v2204 = vmax.f32 %v1497, 0.0
      %v2205 = vmax.f32 %v2139, 0.0
      %v2206 = vmax.f32 %v2141, 0.0
      %v2207 = vld [vmem:[%s3] sm:$0xff]
      %v2208 = vld [vmem:[%s3 + $0x8] sm:$0xff]
      %v2209 = vld [vmem:[%s3 + $0x10] sm:$0xff]
      %v2210 = vld [vmem:[%s3 + $0x18] sm:$0xff]
      %v2211 = vld [vmem:[%s3 + $0x20] sm:$0xff]
      %v2212 = vld [vmem:[%s3 + $0x28] sm:$0xff]
      %v2213 = vld [vmem:[%s3 + $0x30] sm:$0xff]
      %v2214 = vld [vmem:[%s3 + $0x38] sm:$0xff]
      %v2215 = vld [vmem:[%s3 + $0x40] sm:$0xff]
      %v2216 = vld [vmem:[%s3 + $0x48] sm:$0xff]
      %v2217 = vld [vmem:[%s3 + $0x50] sm:$0xff]
      %v2218 = vld [vmem:[%s3 + $0x58] sm:$0xff]
      %v2219 = vld [vmem:[%s3 + $0x60] sm:$0xff]
      %v2220 = vld [vmem:[%s3 + $0x68] sm:$0xff]
      %v2221 = vld [vmem:[%s3 + $0x70] sm:$0xff]
      %v2222 = vld [vmem:[%s3 + $0x78] sm:$0xff]
      %v2223 = vld [vmem:[%s3 + $0x80] sm:$0xff]
      %v2224 = vld [vmem:[%s3 + $0x88] sm:$0xff]
      %v2225 = vld [vmem:[%s3 + $0x90] sm:$0xff]
      %v2226 = vld [vmem:[%s3 + $0x98] sm:$0xff]
      %v2227 = vld [vmem:[%s3 + $0xa0] sm:$0xff]
      %v2228 = vld [vmem:[%s3 + $0xa8] sm:$0xff]
      %v2229 = vld [vmem:[%s3 + $0xb0] sm:$0xff]
      %v2230 = vld [vmem:[%s3 + $0xb8] sm:$0xff]
      %v2231 = vld [vmem:[%s3 + $0xc0] sm:$0xff]
      %v2232 = vld [vmem:[%s3 + $0xc8] sm:$0xff]
      %v2233 = vld [vmem:[%s3 + $0xd0] sm:$0xff]
      %v2234 = vld [vmem:[%s3 + $0xd8] sm:$0xff]
      %v2235 = vld [vmem:[%s3 + $0xe0] sm:$0xff]
      %v2236 = vld [vmem:[%s3 + $0xe8] sm:$0xff]
      %v2237 = vld [vmem:[%s3 + $0xf0] sm:$0xff]
      %v2238 = vld [vmem:[%s3 + $0xf8] sm:$0xff]
      %v2239 = vld [vmem:[%s3 + $0x100] sm:$0xff]
      %v2240 = vld [vmem:[%s3 + $0x108] sm:$0xff]
      %v2241 = vld [vmem:[%s3 + $0x110] sm:$0xff]
      %v2242 = vld [vmem:[%s3 + $0x118] sm:$0xff]
      %v2243 = vld [vmem:[%s3 + $0x120] sm:$0xff]
      %v2244 = vld [vmem:[%s3 + $0x128] sm:$0xff]
      %v2245 = vld [vmem:[%s3 + $0x130] sm:$0xff]
      %v2246 = vld [vmem:[%s3 + $0x138] sm:$0xff]
      %v2247 = vld [vmem:[%s3 + $0x140] sm:$0xff]
      %v2248 = vld [vmem:[%s3 + $0x148] sm:$0xff]
      %v2249 = vld [vmem:[%s3 + $0x150] sm:$0xff]
      %v2250 = vld [vmem:[%s3 + $0x158] sm:$0xff]
      %v2251 = vld [vmem:[%s3 + $0x160] sm:$0xff]
      %v2252 = vld [vmem:[%s3 + $0x168] sm:$0xff]
      %v2253 = vld [vmem:[%s3 + $0x170] sm:$0xff]
      %v2254 = vld [vmem:[%s3 + $0x178] sm:$0xff]
      %v2255 = vld [vmem:[%s3 + $0x180] sm:$0xff]
      %v2256 = vld [vmem:[%s3 + $0x188] sm:$0xff]
      %v2257 = vld [vmem:[%s4] sm:$0x1]
      %v2259 = vlaneseq
      %v2260 = vshrl.u32 %v2259, 7
      %v2261 = vsub.s32 0, %v2260
      %v2262 = vrot.slane %v2257, %v2261
      %v2265 = vsel %vm806, %v2146, 0
      %v2268 = vsel %vm806, %v2150, 0
      %v2271 = vsel %vm806, %v2154, 0
      %v2274 = vsel %vm806, %v2158, 0
      %v2277 = vsel %vm806, %v2162, 0
      %v2280 = vsel %vm806, %v2166, 0
      %v2283 = vsel %vm806, %v2170, 0
      %v2286 = vsel %vm806, %v2174, 0
      %v2289 = vsel %vm806, %v2178, 0
      %v2292 = vsel %vm806, %v2182, 0
      %v2295 = vsel %vm806, %v2186, 0
      %v2298 = vsel %vm806, %v2190, 0
      %v2301 = vsel %vm806, %v2194, 0
      %v2304 = vsel %vm806, %v2198, 0
      %v2307 = vsel %vm806, %v2202, 0
      %v2310 = vsel %vm806, %v2206, 0
      %2312 = vmatprep.subr.mxu0 0.0
      %2313 = vmatpush1.msra.mxu0 %v2222
      %2314 = vmatprep.subr.mxu0 0.0
      %2315 = vmatpush1.msra.mxu0 %v2221
      %2316 = vmatprep.subr.mxu0 0.0
      %2317 = vmatpush1.msra.mxu0 %v2220
      %2318 = vmatprep.subr.mxu0 0.0
      %2319 = vmatpush1.msra.mxu0 %v2219
      %2320 = vmatprep.subr.mxu0 0.0
      %2321 = vmatpush1.msra.mxu0 %v2218
      %2322 = vmatprep.subr.mxu0 0.0
      %2323 = vmatpush1.msra.mxu0 %v2217
      %2324 = vmatprep.subr.mxu0 0.0
      %2325 = vmatpush1.msra.mxu0 %v2216
      %2326 = vmatprep.subr.mxu0 0.0
      %2327 = vmatpush1.msra.mxu0 %v2215
      %2328 = vmatprep.subr.mxu0 0.0
      %2329 = vmatpush1.msra.mxu0 %v2214
      %2330 = vmatprep.subr.mxu0 0.0
      %2331 = vmatpush1.msra.mxu0 %v2213
      %2332 = vmatprep.subr.mxu0 0.0
      %2333 = vmatpush1.msra.mxu0 %v2212
      %2334 = vmatprep.subr.mxu0 0.0
      %2335 = vmatpush1.msra.mxu0 %v2211
      %2336 = vmatprep.subr.mxu0 0.0
      %2337 = vmatpush1.msra.mxu0 %v2210
      %2338 = vmatprep.subr.mxu0 0.0
      %2339 = vmatpush1.msra.mxu0 %v2209
      %2340 = vmatprep.subr.mxu0 0.0
      %2341 = vmatpush1.msra.mxu0 %v2208
      %2342 = vmatprep.subr.mxu0 0.0
      %2343 = vmatpush1.msra.mxu0 %v2207
      %2344 = vmatprep.subr.mxu0 0.0
      %2345 = vmatpush2.msra.mxu0 %v2238
      %2346 = vmatprep.subr.mxu0 0.0
      %2347 = vmatpush2.msra.mxu0 %v2237
      %2348 = vmatprep.subr.mxu0 0.0
      %2349 = vmatpush2.msra.mxu0 %v2236
      %2350 = vmatprep.subr.mxu0 0.0
      %2351 = vmatpush2.msra.mxu0 %v2235
      %2352 = vmatprep.subr.mxu0 0.0
      %2353 = vmatpush2.msra.mxu0 %v2234
      %2354 = vmatprep.subr.mxu0 0.0
      %2355 = vmatpush2.msra.mxu0 %v2233
      %2356 = vmatprep.subr.mxu0 0.0
      %2357 = vmatpush2.msra.mxu0 %v2232
      %2358 = vmatprep.subr.mxu0 0.0
      %2359 = vmatpush2.msra.mxu0 %v2231
      %2360 = vmatprep.subr.mxu0 0.0
      %2361 = vmatpush2.msra.mxu0 %v2230
      %2362 = vmatprep.subr.mxu0 0.0
      %2363 = vmatpush2.msra.mxu0 %v2229
      %2364 = vmatprep.subr.mxu0 0.0
      %2365 = vmatpush2.msra.mxu0 %v2228
      %2366 = vmatprep.subr.mxu0 0.0
      %2367 = vmatpush2.msra.mxu0 %v2227
      %2368 = vmatprep.subr.mxu0 0.0
      %2369 = vmatpush2.msra.mxu0 %v2226
      %2370 = vmatprep.subr.mxu0 0.0
      %2371 = vmatpush2.msra.mxu0 %v2225
      %2372 = vmatprep.subr.mxu0 0.0
      %2373 = vmatpush2.msra.mxu0 %v2224
      %2374 = vmatprep.subr.mxu0 0.0
      %2375 = vmatpush2.msra.mxu0 %v2223
      %2376 = vmatprep.mubr.f32.mxu0 %v2144
      %2377 = vmatmul.mubr.f32.gmra.mxu0 %v2143
      %v2378 = vpop.f32.mrf.mxu0
      %v2379 = vadd.f32 %v2262, %v2378
      %v2380 = vpop.f32.mrf.mxu0
      %2381 = vmatprep.mubr.f32.mxu0 %v2148
      %2382 = vmatmul.mubr.f32.gmra.mxu0 %v2147
      %v2383 = vpop.f32.mrf.mxu0
      %v2384 = vadd.f32 %v2262, %v2383
      %v2385 = vpop.f32.mrf.mxu0
      %2386 = vmatprep.mubr.f32.mxu0 %v2152
      %2387 = vmatmul.mubr.f32.gmra.mxu0 %v2151
      %v2388 = vpop.f32.mrf.mxu0
      %v2389 = vadd.f32 %v2262, %v2388
      %v2390 = vpop.f32.mrf.mxu0
      %2391 = vmatprep.mubr.f32.mxu0 %v2156
      %2392 = vmatmul.mubr.f32.gmra.mxu0 %v2155
      %v2393 = vpop.f32.mrf.mxu0
      %v2394 = vadd.f32 %v2262, %v2393
      %v2395 = vpop.f32.mrf.mxu0
      %2396 = vmatprep.mubr.f32.mxu0 %v2160
      %2397 = vmatmul.mubr.f32.gmra.mxu0 %v2159
      %v2398 = vpop.f32.mrf.mxu0
      %v2399 = vadd.f32 %v2262, %v2398
      %v2400 = vpop.f32.mrf.mxu0
      %2401 = vmatprep.mubr.f32.mxu0 %v2164
      %2402 = vmatmul.mubr.f32.gmra.mxu0 %v2163
      %v2403 = vpop.f32.mrf.mxu0
      %v2404 = vadd.f32 %v2262, %v2403
      %v2405 = vpop.f32.mrf.mxu0
      %2406 = vmatprep.mubr.f32.mxu0 %v2168
      %2407 = vmatmul.mubr.f32.gmra.mxu0 %v2167
      %v2408 = vpop.f32.mrf.mxu0
      %v2409 = vadd.f32 %v2262, %v2408
      %v2410 = vpop.f32.mrf.mxu0
      %2411 = vmatprep.mubr.f32.mxu0 %v2172
      %2412 = vmatmul.mubr.f32.gmra.mxu0 %v2171
      %v2413 = vpop.f32.mrf.mxu0
      %v2414 = vadd.f32 %v2262, %v2413
      %v2415 = vpop.f32.mrf.mxu0
      %2416 = vmatprep.mubr.f32.mxu0 %v2176
      %2417 = vmatmul.mubr.f32.gmra.mxu0 %v2175
      %v2418 = vpop.f32.mrf.mxu0
      %v2419 = vadd.f32 %v2262, %v2418
      %v2420 = vpop.f32.mrf.mxu0
      %2421 = vmatprep.mubr.f32.mxu0 %v2180
      %2422 = vmatmul.mubr.f32.gmra.mxu0 %v2179
      %v2423 = vpop.f32.mrf.mxu0
      %v2424 = vadd.f32 %v2262, %v2423
      %v2425 = vpop.f32.mrf.mxu0
      %2426 = vmatprep.mubr.f32.mxu0 %v2184
      %2427 = vmatmul.mubr.f32.gmra.mxu0 %v2183
      %v2428 = vpop.f32.mrf.mxu0
      %v2429 = vadd.f32 %v2262, %v2428
      %v2430 = vpop.f32.mrf.mxu0
      %2431 = vmatprep.mubr.f32.mxu0 %v2188
      %2432 = vmatmul.mubr.f32.gmra.mxu0 %v2187
      %v2433 = vpop.f32.mrf.mxu0
      %v2434 = vadd.f32 %v2262, %v2433
      %v2435 = vpop.f32.mrf.mxu0
      %2436 = vmatprep.mubr.f32.mxu0 %v2192
      %2437 = vmatmul.mubr.f32.gmra.mxu0 %v2191
      %v2438 = vpop.f32.mrf.mxu0
      %v2439 = vadd.f32 %v2262, %v2438
      %v2440 = vpop.f32.mrf.mxu0
      %2441 = vmatprep.mubr.f32.mxu0 %v2196
      %2442 = vmatmul.mubr.f32.gmra.mxu0 %v2195
      %v2443 = vpop.f32.mrf.mxu0
      %v2444 = vadd.f32 %v2262, %v2443
      %v2445 = vpop.f32.mrf.mxu0
      %2446 = vmatprep.mubr.f32.mxu0 %v2200
      %2447 = vmatmul.mubr.f32.gmra.mxu0 %v2199
      %v2448 = vpop.f32.mrf.mxu0
      %v2449 = vadd.f32 %v2262, %v2448
      %v2450 = vpop.f32.mrf.mxu0
      %2451 = vmatprep.mubr.f32.mxu0 %v2204
      %2452 = vmatmul.mubr.f32.gmra.mxu0 %v2203
      %v2453 = vpop.f32.mrf.mxu0
      %v2454 = vadd.f32 %v2262, %v2453
      %v2455 = vpop.f32.mrf.mxu0
      %2456 = vdwg.mxu0
      %2457 = vmatprep.subr.mxu0 0.0
      %2458 = vmatpush1.msra.mxu0 %v2254
      %2459 = vmatprep.subr.mxu0 0.0
      %2460 = vmatpush1.msra.mxu0 %v2253
      %2461 = vmatprep.subr.mxu0 0.0
      %2462 = vmatpush1.msra.mxu0 %v2252
      %2463 = vmatprep.subr.mxu0 0.0
      %2464 = vmatpush1.msra.mxu0 %v2251
      %2465 = vmatprep.subr.mxu0 0.0
      %2466 = vmatpush1.msra.mxu0 %v2250
      %2467 = vmatprep.subr.mxu0 0.0
      %2468 = vmatpush1.msra.mxu0 %v2249
      %2469 = vmatprep.subr.mxu0 0.0
      %2470 = vmatpush1.msra.mxu0 %v2248
      %2471 = vmatprep.subr.mxu0 0.0
      %2472 = vmatpush1.msra.mxu0 %v2247
      %2473 = vmatprep.subr.mxu0 0.0
      %2474 = vmatpush1.msra.mxu0 %v2246
      %2475 = vmatprep.subr.mxu0 0.0
      %2476 = vmatpush1.msra.mxu0 %v2245
      %2477 = vmatprep.subr.mxu0 0.0
      %2478 = vmatpush1.msra.mxu0 %v2244
      %2479 = vmatprep.subr.mxu0 0.0
      %2480 = vmatpush1.msra.mxu0 %v2243
      %2481 = vmatprep.subr.mxu0 0.0
      %2482 = vmatpush1.msra.mxu0 %v2242
      %2483 = vmatprep.subr.mxu0 0.0
      %2484 = vmatpush1.msra.mxu0 %v2241
      %2485 = vmatprep.subr.mxu0 0.0
      %2486 = vmatpush1.msra.mxu0 %v2240
      %2487 = vmatprep.subr.mxu0 0.0
      %2488 = vmatpush1.msra.mxu0 %v2239
      %2489 = vmatprep.subr.mxu0 0.0
      %2490 = vmatpush2.msra.mxu0 0.0
      %2491 = vmatprep.subr.mxu0 0.0
      %2492 = vmatpush2.msra.mxu0 0.0
      %2493 = vmatprep.subr.mxu0 0.0
      %2494 = vmatpush2.msra.mxu0 0.0
      %2495 = vmatprep.subr.mxu0 0.0
      %2496 = vmatpush2.msra.mxu0 0.0
      %2497 = vmatprep.subr.mxu0 0.0
      %2498 = vmatpush2.msra.mxu0 0.0
      %2499 = vmatprep.subr.mxu0 0.0
      %2500 = vmatpush2.msra.mxu0 0.0
      %2501 = vmatprep.subr.mxu0 0.0
      %2502 = vmatpush2.msra.mxu0 0.0
      %2503 = vmatprep.subr.mxu0 0.0
      %2504 = vmatpush2.msra.mxu0 0.0
      %2505 = vmatprep.subr.mxu0 0.0
      %2506 = vmatpush2.msra.mxu0 0.0
      %2507 = vmatprep.subr.mxu0 0.0
      %2508 = vmatpush2.msra.mxu0 0.0
      %2509 = vmatprep.subr.mxu0 0.0
      %2510 = vmatpush2.msra.mxu0 0.0
      %2511 = vmatprep.subr.mxu0 0.0
      %2512 = vmatpush2.msra.mxu0 0.0
      %2513 = vmatprep.subr.mxu0 0.0
      %2514 = vmatpush2.msra.mxu0 0.0
      %2515 = vmatprep.subr.mxu0 0.0
      %2516 = vmatpush2.msra.mxu0 0.0
      %2517 = vmatprep.subr.mxu0 0.0
      %2518 = vmatpush2.msra.mxu0 %v2256
      %2519 = vmatprep.subr.mxu0 0.0
      %2520 = vmatpush2.msra.mxu0 %v2255
      %2521 = vmatprep.mubr.f32.mxu0 %v2265
      %2522 = vmatmul.mubr.f32.gmra.mxu0 %v2145
      %v2523 = vpop.f32.mrf.mxu0
      %v2524 = vadd.f32 %v2379, %v2523
      %v2525 = vpop.f32.mrf.mxu0
      %2526 = vmatprep.mubr.f32.mxu0 %v2268
      %2527 = vmatmul.mubr.f32.gmra.mxu0 %v2149
      %v2528 = vpop.f32.mrf.mxu0
      %v2529 = vadd.f32 %v2384, %v2528
      %v2530 = vpop.f32.mrf.mxu0
      %2531 = vmatprep.mubr.f32.mxu0 %v2271
      %2532 = vmatmul.mubr.f32.gmra.mxu0 %v2153
      %v2533 = vpop.f32.mrf.mxu0
      %v2534 = vadd.f32 %v2389, %v2533
      %v2535 = vpop.f32.mrf.mxu0
      %2536 = vmatprep.mubr.f32.mxu0 %v2274
      %2537 = vmatmul.mubr.f32.gmra.mxu0 %v2157
      %v2538 = vpop.f32.mrf.mxu0
      %v2539 = vadd.f32 %v2394, %v2538
      %v2540 = vpop.f32.mrf.mxu0
      %2541 = vmatprep.mubr.f32.mxu0 %v2277
      %2542 = vmatmul.mubr.f32.gmra.mxu0 %v2161
      %v2543 = vpop.f32.mrf.mxu0
      %v2544 = vadd.f32 %v2399, %v2543
      %v2545 = vpop.f32.mrf.mxu0
      %2546 = vmatprep.mubr.f32.mxu0 %v2280
      %2547 = vmatmul.mubr.f32.gmra.mxu0 %v2165
      %v2548 = vpop.f32.mrf.mxu0
      %v2549 = vadd.f32 %v2404, %v2548
      %v2550 = vpop.f32.mrf.mxu0
      %2551 = vmatprep.mubr.f32.mxu0 %v2283
      %2552 = vmatmul.mubr.f32.gmra.mxu0 %v2169
      %v2553 = vpop.f32.mrf.mxu0
      %v2554 = vadd.f32 %v2409, %v2553
      %v2555 = vpop.f32.mrf.mxu0
      %2556 = vmatprep.mubr.f32.mxu0 %v2286
      %2557 = vmatmul.mubr.f32.gmra.mxu0 %v2173
      %v2558 = vpop.f32.mrf.mxu0
      %v2559 = vadd.f32 %v2414, %v2558
      %v2560 = vpop.f32.mrf.mxu0
      %2561 = vmatprep.mubr.f32.mxu0 %v2289
      %2562 = vmatmul.mubr.f32.gmra.mxu0 %v2177
      %v2563 = vpop.f32.mrf.mxu0
      %v2564 = vadd.f32 %v2419, %v2563
      %v2565 = vpop.f32.mrf.mxu0
      %2566 = vmatprep.mubr.f32.mxu0 %v2292
      %2567 = vmatmul.mubr.f32.gmra.mxu0 %v2181
      %v2568 = vpop.f32.mrf.mxu0
      %v2569 = vadd.f32 %v2424, %v2568
      %v2570 = vpop.f32.mrf.mxu0
      %2571 = vmatprep.mubr.f32.mxu0 %v2295
      %2572 = vmatmul.mubr.f32.gmra.mxu0 %v2185
      %v2573 = vpop.f32.mrf.mxu0
      %v2574 = vadd.f32 %v2429, %v2573
      %v2575 = vpop.f32.mrf.mxu0
      %2576 = vmatprep.mubr.f32.mxu0 %v2298
      %2577 = vmatmul.mubr.f32.gmra.mxu0 %v2189
      %v2578 = vpop.f32.mrf.mxu0
      %v2579 = vadd.f32 %v2434, %v2578
      %v2580 = vpop.f32.mrf.mxu0
      %2581 = vmatprep.mubr.f32.mxu0 %v2301
      %2582 = vmatmul.mubr.f32.gmra.mxu0 %v2193
      %v2583 = vpop.f32.mrf.mxu0
      %v2584 = vadd.f32 %v2439, %v2583
      %v2585 = vpop.f32.mrf.mxu0
      %2586 = vmatprep.mubr.f32.mxu0 %v2304
      %2587 = vmatmul.mubr.f32.gmra.mxu0 %v2197
      %v2588 = vpop.f32.mrf.mxu0
      %v2589 = vadd.f32 %v2444, %v2588
      %v2590 = vpop.f32.mrf.mxu0
      %2591 = vmatprep.mubr.f32.mxu0 %v2307
      %2592 = vmatmul.mubr.f32.gmra.mxu0 %v2201
      %v2593 = vpop.f32.mrf.mxu0
      %v2594 = vadd.f32 %v2449, %v2593
      %v2595 = vpop.f32.mrf.mxu0
      %2596 = vmatprep.mubr.f32.mxu0 %v2310
      %2597 = vmatmul.mubr.f32.gmra.mxu0 %v2205
      %v2598 = vpop.f32.mrf.mxu0
      %v2599 = vadd.f32 %v2454, %v2598
      %v2600 = vpop.f32.mrf.mxu0
      %2601 = vdwg.mxu0
      %v2602 = vmul.f32 %v2524, 0.5
      %v2603 = vmul.f32 %v2529, 0.5
      %v2604 = vmul.f32 %v2534, 0.5
      %v2605 = vmul.f32 %v2539, 0.5
      %v2606 = vmul.f32 %v2544, 0.5
      %v2607 = vmul.f32 %v2549, 0.5
      %v2608 = vmul.f32 %v2554, 0.5
      %v2609 = vmul.f32 %v2559, 0.5
      %v2610 = vmul.f32 %v2564, 0.5
      %v2611 = vmul.f32 %v2569, 0.5
      %v2612 = vmul.f32 %v2574, 0.5
      %v2613 = vmul.f32 %v2579, 0.5
      %v2614 = vmul.f32 %v2584, 0.5
      %v2615 = vmul.f32 %v2589, 0.5
      %v2616 = vmul.f32 %v2594, 0.5
      %v2617 = vmul.f32 %v2599, 0.5
      %v2618 = vmul.f32 %v2602, 1.442695
      %v2619 = vpow.pop %v2618
      %v2620 = vmul.f32 %v2603, 1.442695
      %v2621 = vpow.pop %v2620
      %v2622 = vmul.f32 %v2604, 1.442695
      %v2623 = vpow.pop %v2622
      %v2624 = vmul.f32 %v2605, 1.442695
      %v2625 = vpow.pop %v2624
      %v2626 = vmul.f32 %v2606, 1.442695
      %v2627 = vpow.pop %v2626
      %v2628 = vmul.f32 %v2607, 1.442695
      %v2629 = vpow.pop %v2628
      %v2630 = vmul.f32 %v2608, 1.442695
      %v2631 = vpow.pop %v2630
      %v2632 = vmul.f32 %v2609, 1.442695
      %v2633 = vpow.pop %v2632
      %v2634 = vmul.f32 %v2610, 1.442695
      %v2635 = vpow.pop %v2634
      %v2636 = vmul.f32 %v2611, 1.442695
      %v2637 = vpow.pop %v2636
      %v2638 = vmul.f32 %v2612, 1.442695
      %v2639 = vpow.pop %v2638
      %v2640 = vmul.f32 %v2613, 1.442695
      %v2641 = vpow.pop %v2640
      %v2642 = vmul.f32 %v2614, 1.442695
      %v2643 = vpow.pop %v2642
      %v2644 = vmul.f32 %v2615, 1.442695
      %v2645 = vpow.pop %v2644
      %v2646 = vmul.f32 %v2616, 1.442695
      %v2647 = vpow.pop %v2646
      %v2648 = vmul.f32 %v2617, 1.442695
      %v2649 = vpow.pop %v2648
      %v2650 = vld [vmem:[%s272] sm:$0xff]
      %v2651 = vld [vmem:[%s272 + $0x8] sm:$0xff]
      %v2652 = vld [vmem:[%s272 + $0x10] sm:$0xff]
      %v2653 = vld [vmem:[%s272 + $0x18] sm:$0xff]
      %v2654 = vld [vmem:[%s272 + $0x20] sm:$0xff]
      %v2655 = vld [vmem:[%s272 + $0x28] sm:$0xff]
      %v2656 = vld [vmem:[%s272 + $0x30] sm:$0xff]
      %v2657 = vld [vmem:[%s272 + $0x38] sm:$0xff]
      %v2658 = vld [vmem:[%s272 + $0x40] sm:$0xff]
      %v2659 = vld [vmem:[%s272 + $0x48] sm:$0xff]
      %v2660 = vld [vmem:[%s272 + $0x50] sm:$0xff]
      %v2661 = vld [vmem:[%s272 + $0x58] sm:$0xff]
      %v2662 = vld [vmem:[%s272 + $0x60] sm:$0xff]
      %v2663 = vld [vmem:[%s272 + $0x68] sm:$0xff]
      %v2664 = vld [vmem:[%s272 + $0x70] sm:$0xff]
      %v2665 = vld [vmem:[%s272 + $0x78] sm:$0xff]
      %2682 = vrot.lane.b32.xlu0 %v2650, 20
      %v2683 = vpop.permute.xlu0 %2682
      %2684 = vrot.lane.b32.xlu0 %v2651, 20
      %v2685 = vpop.permute.xlu0 %2684
      %2686 = vrot.lane.b32.xlu0 %v2652, 20
      %v2687 = vpop.permute.xlu0 %2686
      %2688 = vrot.lane.b32.xlu0 %v2653, 20
      %v2689 = vpop.permute.xlu0 %2688
      %2690 = vrot.lane.b32.xlu0 %v2654, 20
      %v2691 = vpop.permute.xlu0 %2690
      %2692 = vrot.lane.b32.xlu0 %v2655, 20
      %v2693 = vpop.permute.xlu0 %2692
      %2694 = vrot.lane.b32.xlu0 %v2656, 20
      %v2695 = vpop.permute.xlu0 %2694
      %2696 = vrot.lane.b32.xlu0 %v2657, 20
      %v2697 = vpop.permute.xlu0 %2696
      %2698 = vrot.lane.b32.xlu0 %v2658, 20
      %v2699 = vpop.permute.xlu0 %2698
      %2700 = vrot.lane.b32.xlu0 %v2659, 20
      %v2701 = vpop.permute.xlu0 %2700
      %2702 = vrot.lane.b32.xlu0 %v2660, 20
      %v2703 = vpop.permute.xlu0 %2702
      %2704 = vrot.lane.b32.xlu0 %v2661, 20
      %v2705 = vpop.permute.xlu0 %2704
      %2706 = vrot.lane.b32.xlu0 %v2662, 20
      %v2707 = vpop.permute.xlu0 %2706
      %2708 = vrot.lane.b32.xlu0 %v2663, 20
      %v2709 = vpop.permute.xlu0 %2708
      %2710 = vrot.lane.b32.xlu0 %v2664, 20
      %v2711 = vpop.permute.xlu0 %2710
      %2712 = vrot.lane.b32.xlu0 %v2665, 20
      %v2713 = vpop.permute.xlu0 %2712
      %v2730 = vmul.f32 %v2619, %v2683
      %v2731 = vmul.f32 %v2621, %v2685
      %v2732 = vmul.f32 %v2623, %v2687
      %v2733 = vmul.f32 %v2625, %v2689
      %v2734 = vmul.f32 %v2627, %v2691
      %v2735 = vmul.f32 %v2629, %v2693
      %v2736 = vmul.f32 %v2631, %v2695
      %v2737 = vmul.f32 %v2633, %v2697
      %v2738 = vmul.f32 %v2635, %v2699
      %v2739 = vmul.f32 %v2637, %v2701
      %v2740 = vmul.f32 %v2639, %v2703
      %v2741 = vmul.f32 %v2641, %v2705
      %v2742 = vmul.f32 %v2643, %v2707
      %v2743 = vmul.f32 %v2645, %v2709
      %v2744 = vmul.f32 %v2647, %v2711
      %v2745 = vmul.f32 %v2649, %v2713
      %2762 = vrot.lane.b32.xlu0 %v2730, 108
      %v2763 = vpop.permute.xlu0 %2762
      %2764 = vrot.lane.b32.xlu0 %v2731, 108
      %v2765 = vpop.permute.xlu0 %2764
      %2766 = vrot.lane.b32.xlu0 %v2732, 108
      %v2767 = vpop.permute.xlu0 %2766
      %2768 = vrot.lane.b32.xlu0 %v2733, 108
      %v2769 = vpop.permute.xlu0 %2768
      %2770 = vrot.lane.b32.xlu0 %v2734, 108
      %v2771 = vpop.permute.xlu0 %2770
      %2772 = vrot.lane.b32.xlu0 %v2735, 108
      %v2773 = vpop.permute.xlu0 %2772
      %2774 = vrot.lane.b32.xlu0 %v2736, 108
      %v2775 = vpop.permute.xlu0 %2774
      %2776 = vrot.lane.b32.xlu0 %v2737, 108
      %v2777 = vpop.permute.xlu0 %2776
      %2778 = vrot.lane.b32.xlu0 %v2738, 108
      %v2779 = vpop.permute.xlu0 %2778
      %2780 = vrot.lane.b32.xlu0 %v2739, 108
      %v2781 = vpop.permute.xlu0 %2780
      %2782 = vrot.lane.b32.xlu0 %v2740, 108
      %v2783 = vpop.permute.xlu0 %2782
      %2784 = vrot.lane.b32.xlu0 %v2741, 108
      %v2785 = vpop.permute.xlu0 %2784
      %2786 = vrot.lane.b32.xlu0 %v2742, 108
      %v2787 = vpop.permute.xlu0 %2786
      %2788 = vrot.lane.b32.xlu0 %v2743, 108
      %v2789 = vpop.permute.xlu0 %2788
      %2790 = vrot.lane.b32.xlu0 %v2744, 108
      %v2791 = vpop.permute.xlu0 %2790
      %2792 = vrot.lane.b32.xlu0 %v2745, 108
      %v2793 = vpop.permute.xlu0 %2792
      %v2810 = vadd.f32 %v2524, %v2763
      %v2811 = vadd.f32 %v2529, %v2765
      %v2812 = vadd.f32 %v2534, %v2767
      %v2813 = vadd.f32 %v2539, %v2769
      %v2814 = vadd.f32 %v2544, %v2771
      %v2815 = vadd.f32 %v2549, %v2773
      %v2816 = vadd.f32 %v2554, %v2775
      %v2817 = vadd.f32 %v2559, %v2777
      %v2818 = vadd.f32 %v2564, %v2779
      %v2819 = vadd.f32 %v2569, %v2781
      %v2820 = vadd.f32 %v2574, %v2783
      %v2821 = vadd.f32 %v2579, %v2785
      %v2822 = vadd.f32 %v2584, %v2787
      %v2823 = vadd.f32 %v2589, %v2789
      %v2824 = vadd.f32 %v2594, %v2791
      %v2825 = vadd.f32 %v2599, %v2793
      %2842 = vrot.lane.b32.xlu0 %v2524, 20
      %v2843 = vpop.permute.xlu0 %2842
      %2844 = vrot.lane.b32.xlu0 %v2529, 20
      %v2845 = vpop.permute.xlu0 %2844
      %2846 = vrot.lane.b32.xlu0 %v2534, 20
      %v2847 = vpop.permute.xlu0 %2846
      %2848 = vrot.lane.b32.xlu0 %v2539, 20
      %v2849 = vpop.permute.xlu0 %2848
      %2850 = vrot.lane.b32.xlu0 %v2544, 20
      %v2851 = vpop.permute.xlu0 %2850
      %2852 = vrot.lane.b32.xlu0 %v2549, 20
      %v2853 = vpop.permute.xlu0 %2852
      %2854 = vrot.lane.b32.xlu0 %v2554, 20
      %v2855 = vpop.permute.xlu0 %2854
      %2856 = vrot.lane.b32.xlu0 %v2559, 20
      %v2857 = vpop.permute.xlu0 %2856
      %2858 = vrot.lane.b32.xlu0 %v2564, 20
      %v2859 = vpop.permute.xlu0 %2858
      %2860 = vrot.lane.b32.xlu0 %v2569, 20
      %v2861 = vpop.permute.xlu0 %2860
      %2862 = vrot.lane.b32.xlu0 %v2574, 20
      %v2863 = vpop.permute.xlu0 %2862
      %2864 = vrot.lane.b32.xlu0 %v2579, 20
      %v2865 = vpop.permute.xlu0 %2864
      %2866 = vrot.lane.b32.xlu0 %v2584, 20
      %v2867 = vpop.permute.xlu0 %2866
      %2868 = vrot.lane.b32.xlu0 %v2589, 20
      %v2869 = vpop.permute.xlu0 %2868
      %2870 = vrot.lane.b32.xlu0 %v2594, 20
      %v2871 = vpop.permute.xlu0 %2870
      %2872 = vrot.lane.b32.xlu0 %v2599, 20
      %v2873 = vpop.permute.xlu0 %2872
      %vm2890 = vcmask 162816
      %v2891 = vsel %vm2890, %v2810, %v2843
      %v2892 = vsel %vm2890, %v2811, %v2845
      %v2893 = vsel %vm2890, %v2812, %v2847
      %v2894 = vsel %vm2890, %v2813, %v2849
      %v2895 = vsel %vm2890, %v2814, %v2851
      %v2896 = vsel %vm2890, %v2815, %v2853
      %v2897 = vsel %vm2890, %v2816, %v2855
      %v2898 = vsel %vm2890, %v2817, %v2857
      %v2899 = vsel %vm2890, %v2818, %v2859
      %v2900 = vsel %vm2890, %v2819, %v2861
      %v2901 = vsel %vm2890, %v2820, %v2863
      %v2902 = vsel %vm2890, %v2821, %v2865
      %v2903 = vsel %vm2890, %v2822, %v2867
      %v2904 = vsel %vm2890, %v2823, %v2869
      %v2905 = vsel %vm2890, %v2824, %v2871
      %v2906 = vsel %vm2890, %v2825, %v2873
      %vm2907 = vcmask 326656
      %v2908 = vsel %vm2907, %v2891, %v2843
      %v2909 = vsel %vm2907, %v2892, %v2845
      %v2910 = vsel %vm2907, %v2893, %v2847
      %v2911 = vsel %vm2907, %v2894, %v2849
      %v2912 = vsel %vm2907, %v2895, %v2851
      %v2913 = vsel %vm2907, %v2896, %v2853
      %v2914 = vsel %vm2907, %v2897, %v2855
      %v2915 = vsel %vm2907, %v2898, %v2857
      %v2916 = vsel %vm2907, %v2899, %v2859
      %v2917 = vsel %vm2907, %v2900, %v2861
      %v2918 = vsel %vm2907, %v2901, %v2863
      %v2919 = vsel %vm2907, %v2902, %v2865
      %v2920 = vsel %vm2907, %v2903, %v2867
      %v2921 = vsel %vm2907, %v2904, %v2869
      %v2922 = vsel %vm2907, %v2905, %v2871
      %v2923 = vsel %vm2907, %v2906, %v2873
      %vm2924 = vcmask 490496
      %v2925 = vsel %vm2924, %v2908, 0.0
      %v2926 = vsel %vm2924, %v2909, 0.0
      %v2927 = vsel %vm2924, %v2910, 0.0
      %v2928 = vsel %vm2924, %v2911, 0.0
      %v2929 = vsel %vm2924, %v2912, 0.0
      %v2930 = vsel %vm2924, %v2913, 0.0
      %v2931 = vsel %vm2924, %v2914, 0.0
      %v2932 = vsel %vm2924, %v2915, 0.0
      %v2933 = vsel %vm2924, %v2916, 0.0
      %v2934 = vsel %vm2924, %v2917, 0.0
      %v2935 = vsel %vm2924, %v2918, 0.0
      %v2936 = vsel %vm2924, %v2919, 0.0
      %v2937 = vsel %vm2924, %v2920, 0.0
      %v2938 = vsel %vm2924, %v2921, 0.0
      %v2939 = vsel %vm2924, %v2922, 0.0
      %v2940 = vsel %vm2924, %v2923, 0.0
      %2941 = vst [vmem:[%s278] sm:$0xff] %v2925
      %2942 = vst [vmem:[%s278 + $0x8] sm:$0xff] %v2926
      %2943 = vst [vmem:[%s278 + $0x10] sm:$0xff] %v2927
      %2944 = vst [vmem:[%s278 + $0x18] sm:$0xff] %v2928
      %2945 = vst [vmem:[%s278 + $0x20] sm:$0xff] %v2929
      %2946 = vst [vmem:[%s278 + $0x28] sm:$0xff] %v2930
      %2947 = vst [vmem:[%s278 + $0x30] sm:$0xff] %v2931
      %2948 = vst [vmem:[%s278 + $0x38] sm:$0xff] %v2932
      %2949 = vst [vmem:[%s278 + $0x40] sm:$0xff] %v2933
      %2950 = vst [vmem:[%s278 + $0x48] sm:$0xff] %v2934
      %2951 = vst [vmem:[%s278 + $0x50] sm:$0xff] %v2935
      %2952 = vst [vmem:[%s278 + $0x58] sm:$0xff] %v2936
      %2953 = vst [vmem:[%s278 + $0x60] sm:$0xff] %v2937
      %2954 = vst [vmem:[%s278 + $0x68] sm:$0xff] %v2938
      %2955 = vst [vmem:[%s278 + $0x70] sm:$0xff] %v2939
      %2956 = vst [vmem:[%s278 + $0x78] sm:$0xff] %v2940
      %s2957 = smul.u32 16, %s17
      %p2958 = scmp.lt.s32.totalorder %s2957, 31
      %s2959 = scalar_select %p2958, %s2957, 31
      %s2960 = smul.addr %s2959, 8
      %s2961 = scalar_lea.vmem %s6, %s2960
      // Predicated region
      $region45: #{encoder_forward.1} parent=43 // pred_check
        %p2962 = pneg %p171
      $region46: #{encoder_forward.1} parent=43 // pred_check_branch
        %2964 = sbr.rel (%p2962) target = $region48
      $region47: #{encoder_forward.1} parent=43 // pred_region
        %s2965 = smul.u32 16, %s17
      $region48: #{encoder_forward.1} parent=43 // pred_fallthru
        _
    $region44: #{encoder_forward.1} parent=5 // pred_fallthru
      _
    %p2966 = scmp.le.s32.totalorder 2, %s12
    // Predicated region
    $region49: #{encoder_forward.1} parent=5 // pred_check
      %p2967 = pneg %p2966
    $region50: #{encoder_forward.1} parent=5 // pred_check_branch
      %2969 = sbr.rel (%p2967) target = $region52
    $region51: #{encoder_forward.1} parent=5 // pred_region
      %s2970 = ssub.s32 %s12, 2
      // Predicated region
      $region53: #{encoder_forward.1} parent=51 // pred_check
        %p2971 = pneg %p177
      $region54: #{encoder_forward.1} parent=51 // pred_check_branch
        %2973 = sbr.rel (%p2971) target = $region56
      $region55: #{encoder_forward.1} parent=51 // pred_region
        %s2974 = smul.u32 16, %s18
        %p2975 = scmp.lt.s32.totalorder %s2974, 31
        %s2976 = scalar_select %p2975, %s2974, 31
        %s2977 = smul.addr %s2976, 8
        %s2978 = scalar_lea.vmem %s6, %s2977
      $region56: #{encoder_forward.1} parent=51 // pred_fallthru
        _
    $region52: #{encoder_forward.1} parent=5 // pred_fallthru
      _
  $region6: #{encoder_forward.1} parent=0 // loop_footer
    %s16 = sadd.s32 1, %s12
  $region7: #{encoder_forward.1} parent=0 // loop_footer_branch
    %11 = sbr.rel target = $region3
  $region8: #{encoder_forward.1} parent=0 // loop_exit
    _

</llo_original>
